<compile_context>
chip_gen: v7x
topology: tpu7x:2x2x1
jax: 0.10.0
libtpu: 0.0.40
codegen_flags: <defaults>
</compile_context>

<pallas_src>
import jax
import jax.numpy as jnp
from jax.experimental import pallas as pl
from jax.experimental.pallas import tpu as pltpu


def _llama_mlp_kernel(x_ref, wgu_ref, wd_ref, o_ref, acc_ref):
    """One (m-tile, i-tile) step: fused gate/up matmul, SiLU*up, partial down-proj."""
    k = pl.program_id(1)

    @pl.when(k == 0)
    def _():
        acc_ref[...] = jnp.zeros_like(acc_ref)

    wgu = wgu_ref[...]                              # [H, 2*ti] (gate | up for tile k)
    x = x_ref[...].astype(wgu.dtype)                # [tm, H]
    gu = jnp.dot(x, wgu, preferred_element_type=jnp.float32)   # [tm, 2*ti]
    ti = wgu.shape[-1] // 2                         # static
    g = gu[:, :ti]
    u = gu[:, ti:]
    h = (g * jax.nn.sigmoid(g)) * u                 # SiLU(gate) * up, f32
    acc_ref[...] += jnp.dot(h.astype(wd_ref.dtype), wd_ref[...],
                            preferred_element_type=jnp.float32)

    @pl.when(k == pl.num_programs(1) - 1)
    def _():
        o_ref[...] = acc_ref[...].astype(o_ref.dtype)


def llama_mlp(x, wg, wu, wd, *, tm=None, ti=None, weight_dtype=None,
              out_dtype=None, vmem_limit_bytes=None):
    """x: [..., H]; wg/wu: [H, I]; wd: [I, H]  ->  [..., H]."""
    orig_shape = x.shape
    H = x.shape[-1]
    I = wg.shape[1]
    assert wg.shape == (H, I) and wu.shape == (H, I) and wd.shape == (I, H)

    if weight_dtype is not None:
        wg = wg.astype(weight_dtype)
        wu = wu.astype(weight_dtype)
        wd = wd.astype(weight_dtype)
    out_dtype = out_dtype or x.dtype

    x2d = x.reshape(-1, H)
    M = x2d.shape[0]

    # --- intermediate-dim tile (multiple of 128; per-gen users may pass 1024/512) ---
    if ti is None:
        ti = next((c for c in (512, 256, 128) if I % c == 0), I)
    assert I % ti == 0, "intermediate dim must be divisible by ti"
    n_i = I // ti

    # --- row tile; pad M up so the grid divides evenly ---
    if tm is None:
        tm = 256
    m_pad8 = max(8, -(-M // 8) * 8)
    tm = min(tm, m_pad8)
    Mp = -(-M // tm) * tm
    if Mp != M:
        x2d = jnp.pad(x2d, ((0, Mp - M), (0, 0)))
    n_m = Mp // tm

    # --- fused, tile-contiguous gate/up weights: [n_i, H, 2*ti] ---
    # block k is (gate columns k*ti:(k+1)*ti | up columns k*ti:(k+1)*ti), contiguous in HBM.
    wgu = jnp.concatenate(
        [wg.reshape(H, n_i, ti).transpose(1, 0, 2),
         wu.reshape(H, n_i, ti).transpose(1, 0, 2)],
        axis=-1,
    )

    # --- VMEM budget -> explicit scoped limit with headroom ---
    wb = jnp.dtype(wgu.dtype).itemsize
    xb = jnp.dtype(x2d.dtype).itemsize
    ob = jnp.dtype(out_dtype).itemsize
    budget = (2 * tm * H * xb            # x tile (double-buffered)
              + 2 * H * 2 * ti * wb      # fused gate/up tile (double-buffered)
              + 2 * ti * H * wb          # down-proj tile (double-buffered)
              + tm * H * 4               # f32 accumulator
              + 2 * tm * H * ob          # output tile
              + 2 * tm * 2 * ti * 4)     # in-kernel gu/h temporaries
    if vmem_limit_bytes is None:
        vmem_limit_bytes = min(max(int(1.5 * budget) + (4 << 20), 16 << 20), 100 << 20)

    flops = 2 * Mp * H * (2 * I) + 2 * Mp * I * H
    bytes_accessed = x2d.size * xb + wgu.size * wb + wd.size * wb + Mp * H * ob
    cost = pl.CostEstimate(flops=flops, transcendentals=Mp * I,
                           bytes_accessed=bytes_accessed)

    out2d = pl.pallas_call(
        _llama_mlp_kernel,
        out_shape=jax.ShapeDtypeStruct((Mp, H), out_dtype),
        grid_spec=pltpu.PrefetchScalarGridSpec(
            num_scalar_prefetch=0,
            grid=(n_m, n_i),                                   # (rows, reduction)
            in_specs=[
                pl.BlockSpec((tm, H), lambda m, k: (m, 0)),        # x tile (per m only)
                pl.BlockSpec((None, H, 2 * ti), lambda m, k: (k, 0, 0)),  # fused gate/up
                pl.BlockSpec((ti, H), lambda m, k: (k, 0)),        # down-proj tile
            ],
            out_specs=pl.BlockSpec((tm, H), lambda m, k: (m, 0)),
            scratch_shapes=[pltpu.VMEM((tm, H), jnp.float32)],
        ),
        compiler_params=pltpu.CompilerParams(
            dimension_semantics=("parallel", "arbitrary"),
            vmem_limit_bytes=vmem_limit_bytes,
        ),
        cost_estimate=cost,
    )(x2d, wgu, wd)

    if Mp != M:
        out2d = out2d[:M]
    return out2d.reshape(orig_shape)


def llama_mlp_ref(x, wg, wu, wd):
    g = jnp.einsum("bsh,hi->bsi", x, wg)
    u = jnp.einsum("bsh,hi->bsi", x, wu)
    h = jax.nn.silu(g) * u
    return jnp.einsum("bsi,ih->bsh", h, wd)


if __name__ == "__main__":
    # Small, Llama-MLP-consistent shapes (real models use H=4096, I=11008+).
    # TODO(synk): weights are synthetic stand-ins; the PyTorch module pulls them
    # from a HF reference checkpoint which is not available in-script.
    B, S, H, I = 2, 64, 128, 512

    key = jax.random.PRNGKey(0)
    kx, kg, ku, kd = jax.random.split(key, 4)
    x = jax.random.normal(kx, (B, S, H), dtype=jnp.float32)
    wg = jax.random.normal(kg, (H, I), dtype=jnp.float32) * 0.05
    wu = jax.random.normal(ku, (H, I), dtype=jnp.float32) * 0.05
    wd = jax.random.normal(kd, (I, H), dtype=jnp.float32) * 0.05

    ref = llama_mlp_ref(x, wg, wu, wd)

    # Default (large) tiles — single grid step at these toy shapes.
    out = llama_mlp(x, wg, wu, wd)
    jax.block_until_ready(out)
    assert out.shape == (B, S, H)
    assert jnp.allclose(out, ref, atol=1e-4, rtol=1e-4), "mismatch (default tiles)"

    # Small explicit tiles — exercises both grid axes (M parallel, I reduction).
    out2 = llama_mlp(x, wg, wu, wd, tm=64, ti=128)
    jax.block_until_ready(out2)
    assert jnp.allclose(out2, ref, atol=1e-4, rtol=1e-4), "mismatch (tiled grid)"

    # bf16 weight path (halves HBM weight traffic); quantization => looser tol.
    out3 = llama_mlp(x, wg, wu, wd, tm=64, ti=128, weight_dtype=jnp.bfloat16)
    jax.block_until_ready(out3)
    assert jnp.allclose(out3, ref, atol=5e-2, rtol=5e-2), "mismatch (bf16 weights)"

    print("KERNEL_OK")
</pallas_src>

<mosaic_0001>
module attributes {stable_mosaic.version = 11 : i64} {
  func.func @_llama_mlp_kernel(%arg0: i32, %arg1: i32, %arg2: memref<128x128xf32, #tpu.memory_space<vmem>>, %arg3: memref<1x128x1024xf32, #tpu.memory_space<vmem>>, %arg4: memref<512x128xf32, #tpu.memory_space<vmem>>, %arg5: memref<128x128xf32, #tpu.memory_space<vmem>>, %arg6: memref<128x128xf32, #tpu.memory_space<vmem>>) attributes {dimension_semantics = [#tpu.dimension_semantics<parallel>, #tpu.dimension_semantics<arbitrary>], iteration_bounds = array<i64: 1, 1>, scalar_prefetch = 0 : i64, scratch_operands = 1 : i64, tpu.core_type = #tpu.core_type<tc>, window_params = [{transform_indices = @transform_0, window_bounds = array<i64: 128, 128>}, {transform_indices = @transform_1, window_bounds = array<i64: 1, 128, 1024>}, {transform_indices = @transform_2, window_bounds = array<i64: 512, 128>}, {transform_indices = @transform_3, window_bounds = array<i64: 128, 128>}]} {
    %c0_i32 = arith.constant 0 : i32
    %0 = arith.cmpi eq, %arg1, %c0_i32 : i32
    %1 = arith.extui %0 : i1 to i32
    %c0_i32_0 = arith.constant 0 : i32
    %2 = arith.cmpi ne, %1, %c0_i32_0 : i32
    scf.if %2 {
      %cst_15 = arith.constant 0.000000e+00 : f32
      %24 = vector.broadcast %cst_15 : f32 to vector<128x128xf32>
      %c0_16 = arith.constant 0 : index
      %c0_17 = arith.constant 0 : index
      %25 = vector.load %arg6[%c0_16, %c0_17] : memref<128x128xf32, #tpu.memory_space<vmem>>, vector<128x128xf32>
      tpu.vector_store %arg6[%c0_16, %c0_17], %24 {strides = array<i32>} : memref<128x128xf32, #tpu.memory_space<vmem>>, vector<128x128xf32>,
    } else {
    }
    %c0 = arith.constant 0 : index
    %c0_1 = arith.constant 0 : index
    %c0_2 = arith.constant 0 : index
    %3 = vector.load %arg3[%c0, %c0_1, %c0_2] : memref<1x128x1024xf32, #tpu.memory_space<vmem>>, vector<1x128x1024xf32>
    %4 = vector.shape_cast %3 : vector<1x128x1024xf32> to vector<128x1024xf32>
    %c0_3 = arith.constant 0 : index
    %c0_4 = arith.constant 0 : index
    %5 = vector.load %arg2[%c0_3, %c0_4] : memref<128x128xf32, #tpu.memory_space<vmem>>, vector<128x128xf32>
    %cst = arith.constant dense<0.000000e+00> : vector<128x1024xf32>
    %6 = tpu.matmul %5, %4, %cst {dimension_numbers = #tpu.dot_dimension_numbers<[1], [0], [0], [1], [0, 0, 1, 1], [], []>} : vector<128x128xf32>, vector<128x1024xf32>, vector<128x1024xf32> -> vector<128x1024xf32>
    %7 = vector.extract_strided_slice %6 {offsets = [0, 0], sizes = [128, 512], strides = [1, 1]} : vector<128x1024xf32> to vector<128x512xf32>
    %8 = vector.extract_strided_slice %6 {offsets = [0, 512], sizes = [128, 512], strides = [1, 1]} : vector<128x1024xf32> to vector<128x512xf32>
    %9 = arith.negf %7 : vector<128x512xf32>
    %10 = math.exp %9 : vector<128x512xf32>
    %cst_5 = arith.constant 1.000000e+00 : f32
    %11 = vector.broadcast %cst_5 : f32 to vector<128x512xf32>
    %12 = arith.addf %11, %10 : vector<128x512xf32>
    %13 = arith.divf %11, %12 : vector<128x512xf32>
    %14 = arith.mulf %7, %13 : vector<128x512xf32>
    %15 = arith.mulf %14, %8 : vector<128x512xf32>
    %c0_6 = arith.constant 0 : index
    %c0_7 = arith.constant 0 : index
    %16 = vector.load %arg6[%c0_6, %c0_7] : memref<128x128xf32, #tpu.memory_space<vmem>>, vector<128x128xf32>
    %c0_8 = arith.constant 0 : index
    %c0_9 = arith.constant 0 : index
    %17 = vector.load %arg4[%c0_8, %c0_9] : memref<512x128xf32, #tpu.memory_space<vmem>>, vector<512x128xf32>
    %cst_10 = arith.constant dense<0.000000e+00> : vector<128x128xf32>
    %18 = tpu.matmul %15, %17, %cst_10 {dimension_numbers = #tpu.dot_dimension_numbers<[1], [0], [0], [1], [0, 0, 1, 1], [], []>} : vector<128x512xf32>, vector<512x128xf32>, vector<128x128xf32> -> vector<128x128xf32>
    %19 = arith.addf %16, %18 : vector<128x128xf32>
    %c0_11 = arith.constant 0 : index
    %c0_12 = arith.constant 0 : index
    %20 = vector.load %arg6[%c0_11, %c0_12] : memref<128x128xf32, #tpu.memory_space<vmem>>, vector<128x128xf32>
    tpu.vector_store %arg6[%c0_11, %c0_12], %19 {strides = array<i32>} : memref<128x128xf32, #tpu.memory_space<vmem>>, vector<128x128xf32>,
    %c0_i32_13 = arith.constant 0 : i32
    %21 = arith.cmpi eq, %arg1, %c0_i32_13 : i32
    %22 = arith.extui %21 : i1 to i32
    %c0_i32_14 = arith.constant 0 : i32
    %23 = arith.cmpi ne, %22, %c0_i32_14 : i32
    scf.if %23 {
      %c0_15 = arith.constant 0 : index
      %c0_16 = arith.constant 0 : index
      %24 = vector.load %arg6[%c0_15, %c0_16] : memref<128x128xf32, #tpu.memory_space<vmem>>, vector<128x128xf32>
      %c0_17 = arith.constant 0 : index
      %c0_18 = arith.constant 0 : index
      %25 = vector.load %arg5[%c0_17, %c0_18] : memref<128x128xf32, #tpu.memory_space<vmem>>, vector<128x128xf32>
      tpu.vector_store %arg5[%c0_17, %c0_18], %24 {strides = array<i32>} : memref<128x128xf32, #tpu.memory_space<vmem>>, vector<128x128xf32>,
    } else {
    }
    return
  }
  func.func @transform_0(%arg0: i32, %arg1: i32) -> (i32, i32) {
    %c0_i32 = arith.constant 0 : i32
    %c0_i32_0 = arith.constant 0 : i32
    return %arg0, %c0_i32 : i32, i32
  }
  func.func @transform_1(%arg0: i32, %arg1: i32) -> (i32, i32, i32) {
    %c0_i32 = arith.constant 0 : i32
    %c0_i32_0 = arith.constant 0 : i32
    %c0_i32_1 = arith.constant 0 : i32
    return %arg1, %c0_i32, %c0_i32_0 : i32, i32, i32
  }
  func.func @transform_2(%arg0: i32, %arg1: i32) -> (i32, i32) {
    %c0_i32 = arith.constant 0 : i32
    %c0_i32_0 = arith.constant 0 : i32
    return %arg1, %c0_i32 : i32, i32
  }
  func.func @transform_3(%arg0: i32, %arg1: i32) -> (i32, i32) {
    %c0_i32 = arith.constant 0 : i32
    %c0_i32_0 = arith.constant 0 : i32
    return %arg0, %c0_i32 : i32, i32
  }
}

</mosaic_0001>

<llo_original>
// kernel: tpu_custom_call.1
$region0: #{tpu_custom_call.1}
  #allocation0 [shape = 'u32[]', space=smem, size = 0x4, offset = 0x4, fixed_abs, tag = 'smem constant byte address 0x4 - core index']
  #allocation1 [shape = 'u32[144,128]{1,0:T(1,128)}', space=vmem, size = 0x12000, scoped, tag = 'internal scratch']
  #allocation2 [shape = 'f32[128,128]{1,0:T(8,128)}', space=vmem, size = 0x10000, scoped, tag = 'scratch operand']
  %s0 = inlined_call_operand.hbm [shape: f32[128,128], index: 0, kind: input, shape index: {}]
  %s1 = inlined_call_operand.hbm [shape: f32[1,128,1024], index: 1, kind: input, shape index: {}]
  %s2 = inlined_call_operand.hbm [shape: f32[512,128], index: 2, kind: input, shape index: {}]
  %s3 = inlined_call_operand.hbm [shape: f32[128,128], index: 3, kind: output, shape index: {}]
  %s4 = sld [smem:[#allocation0]]
  $region42: #{tpu_custom_call.1} parent=0
    _
  %s6 = ssub.s32 1, %s4
  %s7 = scalar_select 0, %s6, %s4
  $region1: #{tpu_custom_call.1} parent=0
    #allocation3 [shape = 'u8[65536]{0}', space=vmem, size = 0x10000, scoped, tag = 'input window, operand 0, single buffered']
    #allocation4 [shape = 's32[1]{0}', space=sflag, size = 0x4, scoped, tag = 'scoped memory for tpu_custom_call.1']
    #allocation5 [shape = 's32[1]{0}', space=sflag, size = 0x4, scoped, tag = 'scoped memory for tpu_custom_call.1']
    #allocation6 [shape = 'u8[524288]{0}', space=vmem, size = 0x80000, scoped, tag = 'input window, operand 1, single buffered']
    #allocation7 [shape = 's32[1]{0}', space=sflag, size = 0x4, scoped, tag = 'scoped memory for tpu_custom_call.1']
    #allocation8 [shape = 'u8[262144]{0}', space=vmem, size = 0x40000, scoped, tag = 'input window, operand 2, single buffered']
    #allocation9 [shape = 'u8[65536]{0}', space=vmem, size = 0x10000, scoped, tag = 'output window, operand 0, single buffered']
    %8 = vsyncpa [#allocation4], 0
    %9 = vsyncpa [#allocation7], 0
    %10 = vsyncpa [#allocation5], 0
    // Predicated region
    $region2: #{tpu_custom_call.1} parent=1 // pred_check
      _
    $region3: #{tpu_custom_call.1} parent=1 // pred_check_branch
      %12 = sbr.rel (0) target = $region5
    $region4: #{tpu_custom_call.1} parent=1 // pred_region
      %s14 = ssub.s32 2048, 2048
      %15 = vsyncadd [#allocation4], %s14
      %s16 = sshll.u32 [#allocation3], 4
      %s17 = int_to_ptr.vmem [resolvable:$true] %s16
      %22 = dma.hbm_to_vmem [thread:$0]  %s0, 2048, %s17, [#allocation4], 128, 128, 8
    $region5: #{tpu_custom_call.1} parent=1 // pred_fallthru
      _
    // Predicated region
    $region6: #{tpu_custom_call.1} parent=1 // pred_check
      _
    $region7: #{tpu_custom_call.1} parent=1 // pred_check_branch
      %24 = sbr.rel (0) target = $region9
    $region8: #{tpu_custom_call.1} parent=1 // pred_region
      %s26 = ssub.s32 16384, 16384
      %27 = vsyncadd [#allocation7], %s26
      %s28 = sshll.u32 [#allocation6], 4
      %s29 = int_to_ptr.vmem [resolvable:$true] %s28
      %34 = dma.hbm_to_vmem [thread:$0]  %s1, 16384, %s29, [#allocation7], 1024, 1024, 64
    $region9: #{tpu_custom_call.1} parent=1 // pred_fallthru
      _
    // Predicated region
    $region10: #{tpu_custom_call.1} parent=1 // pred_check
      _
    $region11: #{tpu_custom_call.1} parent=1 // pred_check_branch
      %36 = sbr.rel (0) target = $region13
    $region12: #{tpu_custom_call.1} parent=1 // pred_region
      %s38 = ssub.s32 8192, 8192
      %39 = vsyncadd [#allocation7], %s38
      %s40 = sshll.u32 [#allocation8], 4
      %s41 = int_to_ptr.vmem [resolvable:$true] %s40
      %46 = dma.hbm_to_vmem [thread:$0]  %s2, 8192, %s41, [#allocation7], 128, 128, 8
    $region13: #{tpu_custom_call.1} parent=1 // pred_fallthru
      _
    // Predicated region
    $region14: #{tpu_custom_call.1} parent=1 // pred_check
      _
    $region15: #{tpu_custom_call.1} parent=1 // pred_check_branch
      %48 = sbr.rel (0) target = $region17
    $region16: #{tpu_custom_call.1} parent=1 // pred_region
      %49 = dma.done [#allocation4], 2048
    $region17: #{tpu_custom_call.1} parent=1 // pred_fallthru
      _
    // Predicated region
    $region18: #{tpu_custom_call.1} parent=1 // pred_check
      _
    $region19: #{tpu_custom_call.1} parent=1 // pred_check_branch
      %51 = sbr.rel (0) target = $region21
    $region20: #{tpu_custom_call.1} parent=1 // pred_region
      %52 = dma.done [#allocation7], 16384
    $region21: #{tpu_custom_call.1} parent=1 // pred_fallthru
      _
    // Predicated region
    $region22: #{tpu_custom_call.1} parent=1 // pred_check
      _
    $region23: #{tpu_custom_call.1} parent=1 // pred_check_branch
      %54 = sbr.rel (0) target = $region25
    $region24: #{tpu_custom_call.1} parent=1 // pred_region
      %55 = dma.done [#allocation7], 8192
    $region25: #{tpu_custom_call.1} parent=1 // pred_fallthru
      _
    %p56 = scmp.eq.s32.totalorder 0, 0
    // Predicated region
    $region26: #{tpu_custom_call.1} parent=1 // pred_check
      %p57 = pneg %p56
    $region27: #{tpu_custom_call.1} parent=1 // pred_check_branch
      %59 = sbr.rel (%p57) target = $region29
    $region28: #{tpu_custom_call.1} parent=1 // pred_region
      %60 = vst [vmem:[#allocation2] sm:$0xff] 0.0
      %61 = vst [vmem:[#allocation2 + $0x8] sm:$0xff] 0.0
      %62 = vst [vmem:[#allocation2 + $0x10] sm:$0xff] 0.0
      %63 = vst [vmem:[#allocation2 + $0x18] sm:$0xff] 0.0
      %64 = vst [vmem:[#allocation2 + $0x20] sm:$0xff] 0.0
      %65 = vst [vmem:[#allocation2 + $0x28] sm:$0xff] 0.0
      %66 = vst [vmem:[#allocation2 + $0x30] sm:$0xff] 0.0
      %67 = vst [vmem:[#allocation2 + $0x38] sm:$0xff] 0.0
      %68 = vst [vmem:[#allocation2 + $0x40] sm:$0xff] 0.0
      %69 = vst [vmem:[#allocation2 + $0x48] sm:$0xff] 0.0
      %70 = vst [vmem:[#allocation2 + $0x50] sm:$0xff] 0.0
      %71 = vst [vmem:[#allocation2 + $0x58] sm:$0xff] 0.0
      %72 = vst [vmem:[#allocation2 + $0x60] sm:$0xff] 0.0
      %73 = vst [vmem:[#allocation2 + $0x68] sm:$0xff] 0.0
      %74 = vst [vmem:[#allocation2 + $0x70] sm:$0xff] 0.0
      %75 = vst [vmem:[#allocation2 + $0x78] sm:$0xff] 0.0
    $region29: #{tpu_custom_call.1} parent=1 // pred_fallthru
      _
    %v76 = vld [vmem:[#allocation6] sm:$0xff]
    %v77 = vld [vmem:[#allocation6 + $0x8] sm:$0xff]
    %v78 = vld [vmem:[#allocation6 + $0x10] sm:$0xff]
    %v79 = vld [vmem:[#allocation6 + $0x18] sm:$0xff]
    %v80 = vld [vmem:[#allocation6 + $0x20] sm:$0xff]
    %v81 = vld [vmem:[#allocation6 + $0x28] sm:$0xff]
    %v82 = vld [vmem:[#allocation6 + $0x30] sm:$0xff]
    %v83 = vld [vmem:[#allocation6 + $0x38] sm:$0xff]
    %v84 = vld [vmem:[#allocation6 + $0x40] sm:$0xff]
    %v85 = vld [vmem:[#allocation6 + $0x48] sm:$0xff]
    %v86 = vld [vmem:[#allocation6 + $0x50] sm:$0xff]
    %v87 = vld [vmem:[#allocation6 + $0x58] sm:$0xff]
    %v88 = vld [vmem:[#allocation6 + $0x60] sm:$0xff]
    %v89 = vld [vmem:[#allocation6 + $0x68] sm:$0xff]
    %v90 = vld [vmem:[#allocation6 + $0x70] sm:$0xff]
    %v91 = vld [vmem:[#allocation6 + $0x78] sm:$0xff]
    %v92 = vld [vmem:[#allocation6 + $0x80] sm:$0xff]
    %v93 = vld [vmem:[#allocation6 + $0x88] sm:$0xff]
    %v94 = vld [vmem:[#allocation6 + $0x90] sm:$0xff]
    %v95 = vld [vmem:[#allocation6 + $0x98] sm:$0xff]
    %v96 = vld [vmem:[#allocation6 + $0xa0] sm:$0xff]
    %v97 = vld [vmem:[#allocation6 + $0xa8] sm:$0xff]
    %v98 = vld [vmem:[#allocation6 + $0xb0] sm:$0xff]
    %v99 = vld [vmem:[#allocation6 + $0xb8] sm:$0xff]
    %v100 = vld [vmem:[#allocation6 + $0xc0] sm:$0xff]
    %v101 = vld [vmem:[#allocation6 + $0xc8] sm:$0xff]
    %v102 = vld [vmem:[#allocation6 + $0xd0] sm:$0xff]
    %v103 = vld [vmem:[#allocation6 + $0xd8] sm:$0xff]
    %v104 = vld [vmem:[#allocation6 + $0xe0] sm:$0xff]
    %v105 = vld [vmem:[#allocation6 + $0xe8] sm:$0xff]
    %v106 = vld [vmem:[#allocation6 + $0xf0] sm:$0xff]
    %v107 = vld [vmem:[#allocation6 + $0xf8] sm:$0xff]
    %v108 = vld [vmem:[#allocation6 + $0x100] sm:$0xff]
    %v109 = vld [vmem:[#allocation6 + $0x108] sm:$0xff]
    %v110 = vld [vmem:[#allocation6 + $0x110] sm:$0xff]
    %v111 = vld [vmem:[#allocation6 + $0x118] sm:$0xff]
    %v112 = vld [vmem:[#allocation6 + $0x120] sm:$0xff]
    %v113 = vld [vmem:[#allocation6 + $0x128] sm:$0xff]
    %v114 = vld [vmem:[#allocation6 + $0x130] sm:$0xff]
    %v115 = vld [vmem:[#allocation6 + $0x138] sm:$0xff]
    %v116 = vld [vmem:[#allocation6 + $0x140] sm:$0xff]
    %v117 = vld [vmem:[#allocation6 + $0x148] sm:$0xff]
    %v118 = vld [vmem:[#allocation6 + $0x150] sm:$0xff]
    %v119 = vld [vmem:[#allocation6 + $0x158] sm:$0xff]
    %v120 = vld [vmem:[#allocation6 + $0x160] sm:$0xff]
    %v121 = vld [vmem:[#allocation6 + $0x168] sm:$0xff]
    %v122 = vld [vmem:[#allocation6 + $0x170] sm:$0xff]
    %v123 = vld [vmem:[#allocation6 + $0x178] sm:$0xff]
    %v124 = vld [vmem:[#allocation6 + $0x180] sm:$0xff]
    %v125 = vld [vmem:[#allocation6 + $0x188] sm:$0xff]
    %v126 = vld [vmem:[#allocation6 + $0x190] sm:$0xff]
    %v127 = vld [vmem:[#allocation6 + $0x198] sm:$0xff]
    %v128 = vld [vmem:[#allocation6 + $0x1a0] sm:$0xff]
    %v129 = vld [vmem:[#allocation6 + $0x1a8] sm:$0xff]
    %v130 = vld [vmem:[#allocation6 + $0x1b0] sm:$0xff]
    %v131 = vld [vmem:[#allocation6 + $0x1b8] sm:$0xff]
    %v132 = vld [vmem:[#allocation6 + $0x1c0] sm:$0xff]
    %v133 = vld [vmem:[#allocation6 + $0x1c8] sm:$0xff]
    %v134 = vld [vmem:[#allocation6 + $0x1d0] sm:$0xff]
    %v135 = vld [vmem:[#allocation6 + $0x1d8] sm:$0xff]
    %v136 = vld [vmem:[#allocation6 + $0x1e0] sm:$0xff]
    %v137 = vld [vmem:[#allocation6 + $0x1e8] sm:$0xff]
    %v138 = vld [vmem:[#allocation6 + $0x1f0] sm:$0xff]
    %v139 = vld [vmem:[#allocation6 + $0x1f8] sm:$0xff]
    %v140 = vld [vmem:[#allocation6 + $0x200] sm:$0xff]
    %v141 = vld [vmem:[#allocation6 + $0x208] sm:$0xff]
    %v142 = vld [vmem:[#allocation6 + $0x210] sm:$0xff]
    %v143 = vld [vmem:[#allocation6 + $0x218] sm:$0xff]
    %v144 = vld [vmem:[#allocation6 + $0x220] sm:$0xff]
    %v145 = vld [vmem:[#allocation6 + $0x228] sm:$0xff]
    %v146 = vld [vmem:[#allocation6 + $0x230] sm:$0xff]
    %v147 = vld [vmem:[#allocation6 + $0x238] sm:$0xff]
    %v148 = vld [vmem:[#allocation6 + $0x240] sm:$0xff]
    %v149 = vld [vmem:[#allocation6 + $0x248] sm:$0xff]
    %v150 = vld [vmem:[#allocation6 + $0x250] sm:$0xff]
    %v151 = vld [vmem:[#allocation6 + $0x258] sm:$0xff]
    %v152 = vld [vmem:[#allocation6 + $0x260] sm:$0xff]
    %v153 = vld [vmem:[#allocation6 + $0x268] sm:$0xff]
    %v154 = vld [vmem:[#allocation6 + $0x270] sm:$0xff]
    %v155 = vld [vmem:[#allocation6 + $0x278] sm:$0xff]
    %v156 = vld [vmem:[#allocation6 + $0x280] sm:$0xff]
    %v157 = vld [vmem:[#allocation6 + $0x288] sm:$0xff]
    %v158 = vld [vmem:[#allocation6 + $0x290] sm:$0xff]
    %v159 = vld [vmem:[#allocation6 + $0x298] sm:$0xff]
    %v160 = vld [vmem:[#allocation6 + $0x2a0] sm:$0xff]
    %v161 = vld [vmem:[#allocation6 + $0x2a8] sm:$0xff]
    %v162 = vld [vmem:[#allocation6 + $0x2b0] sm:$0xff]
    %v163 = vld [vmem:[#allocation6 + $0x2b8] sm:$0xff]
    %v164 = vld [vmem:[#allocation6 + $0x2c0] sm:$0xff]
    %v165 = vld [vmem:[#allocation6 + $0x2c8] sm:$0xff]
    %v166 = vld [vmem:[#allocation6 + $0x2d0] sm:$0xff]
    %v167 = vld [vmem:[#allocation6 + $0x2d8] sm:$0xff]
    %v168 = vld [vmem:[#allocation6 + $0x2e0] sm:$0xff]
    %v169 = vld [vmem:[#allocation6 + $0x2e8] sm:$0xff]
    %v170 = vld [vmem:[#allocation6 + $0x2f0] sm:$0xff]
    %v171 = vld [vmem:[#allocation6 + $0x2f8] sm:$0xff]
    %v172 = vld [vmem:[#allocation6 + $0x300] sm:$0xff]
    %v173 = vld [vmem:[#allocation6 + $0x308] sm:$0xff]
    %v174 = vld [vmem:[#allocation6 + $0x310] sm:$0xff]
    %v175 = vld [vmem:[#allocation6 + $0x318] sm:$0xff]
    %v176 = vld [vmem:[#allocation6 + $0x320] sm:$0xff]
    %v177 = vld [vmem:[#allocation6 + $0x328] sm:$0xff]
    %v178 = vld [vmem:[#allocation6 + $0x330] sm:$0xff]
    %v179 = vld [vmem:[#allocation6 + $0x338] sm:$0xff]
    %v180 = vld [vmem:[#allocation6 + $0x340] sm:$0xff]
    %v181 = vld [vmem:[#allocation6 + $0x348] sm:$0xff]
    %v182 = vld [vmem:[#allocation6 + $0x350] sm:$0xff]
    %v183 = vld [vmem:[#allocation6 + $0x358] sm:$0xff]
    %v184 = vld [vmem:[#allocation6 + $0x360] sm:$0xff]
    %v185 = vld [vmem:[#allocation6 + $0x368] sm:$0xff]
    %v186 = vld [vmem:[#allocation6 + $0x370] sm:$0xff]
    %v187 = vld [vmem:[#allocation6 + $0x378] sm:$0xff]
    %v188 = vld [vmem:[#allocation6 + $0x380] sm:$0xff]
    %v189 = vld [vmem:[#allocation6 + $0x388] sm:$0xff]
    %v190 = vld [vmem:[#allocation6 + $0x390] sm:$0xff]
    %v191 = vld [vmem:[#allocation6 + $0x398] sm:$0xff]
    %v192 = vld [vmem:[#allocation6 + $0x3a0] sm:$0xff]
    %v193 = vld [vmem:[#allocation6 + $0x3a8] sm:$0xff]
    %v194 = vld [vmem:[#allocation6 + $0x3b0] sm:$0xff]
    %v195 = vld [vmem:[#allocation6 + $0x3b8] sm:$0xff]
    %v196 = vld [vmem:[#allocation6 + $0x3c0] sm:$0xff]
    %v197 = vld [vmem:[#allocation6 + $0x3c8] sm:$0xff]
    %v198 = vld [vmem:[#allocation6 + $0x3d0] sm:$0xff]
    %v199 = vld [vmem:[#allocation6 + $0x3d8] sm:$0xff]
    %v200 = vld [vmem:[#allocation6 + $0x3e0] sm:$0xff]
    %v201 = vld [vmem:[#allocation6 + $0x3e8] sm:$0xff]
    %v202 = vld [vmem:[#allocation6 + $0x3f0] sm:$0xff]
    %v203 = vld [vmem:[#allocation6 + $0x3f8] sm:$0xff]
    %v204 = vld [vmem:[#allocation3] sm:$0xff]
    %v205 = vld [vmem:[#allocation3 + $0x8] sm:$0xff]
    %v206 = vld [vmem:[#allocation3 + $0x10] sm:$0xff]
    %v207 = vld [vmem:[#allocation3 + $0x18] sm:$0xff]
    %v208 = vld [vmem:[#allocation3 + $0x20] sm:$0xff]
    %v209 = vld [vmem:[#allocation3 + $0x28] sm:$0xff]
    %v210 = vld [vmem:[#allocation3 + $0x30] sm:$0xff]
    %v211 = vld [vmem:[#allocation3 + $0x38] sm:$0xff]
    %v212 = vld [vmem:[#allocation3 + $0x40] sm:$0xff]
    %v213 = vld [vmem:[#allocation3 + $0x48] sm:$0xff]
    %v214 = vld [vmem:[#allocation3 + $0x50] sm:$0xff]
    %v215 = vld [vmem:[#allocation3 + $0x58] sm:$0xff]
    %v216 = vld [vmem:[#allocation3 + $0x60] sm:$0xff]
    %v217 = vld [vmem:[#allocation3 + $0x68] sm:$0xff]
    %v218 = vld [vmem:[#allocation3 + $0x70] sm:$0xff]
    %v219 = vld [vmem:[#allocation3 + $0x78] sm:$0xff]
    %220 = vmatprep.subr.mxu0 %v77
    %221 = vmatpush1.msra.mxu0 %v76
    %222 = vmatprep.subr.mxu0 %v85
    %223 = vmatpush1.msra.mxu0 %v84
    %224 = vmatprep.subr.mxu0 %v93
    %225 = vmatpush1.msra.mxu0 %v92
    %226 = vmatprep.subr.mxu0 %v101
    %227 = vmatpush1.msra.mxu0 %v100
    %228 = vmatprep.subr.mxu0 %v109
    %229 = vmatpush1.msra.mxu0 %v108
    %230 = vmatprep.subr.mxu0 %v117
    %231 = vmatpush1.msra.mxu0 %v116
    %232 = vmatprep.subr.mxu0 %v125
    %233 = vmatpush1.msra.mxu0 %v124
    %234 = vmatprep.subr.mxu0 %v133
    %235 = vmatpush1.msra.mxu0 %v132
    %236 = vmatprep.subr.mxu0 %v141
    %237 = vmatpush1.msra.mxu0 %v140
    %238 = vmatprep.subr.mxu0 %v149
    %239 = vmatpush1.msra.mxu0 %v148
    %240 = vmatprep.subr.mxu0 %v157
    %241 = vmatpush1.msra.mxu0 %v156
    %242 = vmatprep.subr.mxu0 %v165
    %243 = vmatpush1.msra.mxu0 %v164
    %244 = vmatprep.subr.mxu0 %v173
    %245 = vmatpush1.msra.mxu0 %v172
    %246 = vmatprep.subr.mxu0 %v181
    %247 = vmatpush1.msra.mxu0 %v180
    %248 = vmatprep.subr.mxu0 %v189
    %249 = vmatpush1.msra.mxu0 %v188
    %250 = vmatprep.subr.mxu0 %v197
    %251 = vmatpush1.msra.mxu0 %v196
    %252 = vmatprep.subr.mxu0 0.0
    %253 = vmatpush1.msra.mxu0 0.0
    %254 = vmatprep.subr.mxu0 0.0
    %255 = vmatpush1.msra.mxu0 0.0
    %256 = vmatprep.subr.mxu0 0.0
    %257 = vmatpush1.msra.mxu0 0.0
    %258 = vmatprep.subr.mxu0 0.0
    %259 = vmatpush1.msra.mxu0 0.0
    %260 = vmatprep.subr.mxu0 0.0
    %261 = vmatpush1.msra.mxu0 0.0
    %262 = vmatprep.subr.mxu0 0.0
    %263 = vmatpush1.msra.mxu0 0.0
    %264 = vmatprep.subr.mxu0 0.0
    %265 = vmatpush1.msra.mxu0 0.0
    %266 = vmatprep.subr.mxu0 0.0
    %267 = vmatpush1.msra.mxu0 0.0
    %268 = vmatprep.subr.mxu0 0.0
    %269 = vmatpush1.msra.mxu0 0.0
    %270 = vmatprep.subr.mxu0 0.0
    %271 = vmatpush1.msra.mxu0 0.0
    %272 = vmatprep.subr.mxu0 0.0
    %273 = vmatpush1.msra.mxu0 0.0
    %274 = vmatprep.subr.mxu0 0.0
    %275 = vmatpush1.msra.mxu0 0.0
    %276 = vmatprep.subr.mxu0 0.0
    %277 = vmatpush1.msra.mxu0 0.0
    %278 = vmatprep.subr.mxu0 0.0
    %279 = vmatpush1.msra.mxu0 0.0
    %280 = vmatprep.subr.mxu0 0.0
    %281 = vmatpush1.msra.mxu0 0.0
    %282 = vmatprep.subr.mxu0 0.0
    %283 = vmatpush1.msra.mxu0 0.0
    %284 = vmatprep.mubr.f32.mxu0 0.0
    %285 = vmatmul.mubr.f32.gmra.mrb[0].mxu0 %v204
    %v286 = vpop.f32.mrb[0].mxu0
    %v287 = vadd.f32 0.0, %v286
    %v288 = vpop.f32.mrb[0].mxu0
    %v289 = vadd.f32 0.0, %v288
    %290 = vmatprep.mubr.f32.mxu0 0.0
    %291 = vmatmul.mubr.f32.gmra.mrb[0].mxu0 %v205
    %v292 = vpop.f32.mrb[0].mxu0
    %v293 = vadd.f32 0.0, %v292
    %v294 = vpop.f32.mrb[0].mxu0
    %v295 = vadd.f32 0.0, %v294
    %296 = vmatprep.mubr.f32.mxu0 0.0
    %297 = vmatmul.mubr.f32.gmra.mrb[0].mxu0 %v206
    %v298 = vpop.f32.mrb[0].mxu0
    %v299 = vadd.f32 0.0, %v298
    %v300 = vpop.f32.mrb[0].mxu0
    %v301 = vadd.f32 0.0, %v300
    %302 = vmatprep.mubr.f32.mxu0 0.0
    %303 = vmatmul.mubr.f32.gmra.mrb[0].mxu0 %v207
    %v304 = vpop.f32.mrb[0].mxu0
    %v305 = vadd.f32 0.0, %v304
    %v306 = vpop.f32.mrb[0].mxu0
    %v307 = vadd.f32 0.0, %v306
    %308 = vmatprep.mubr.f32.mxu0 0.0
    %309 = vmatmul.mubr.f32.gmra.mrb[0].mxu0 %v208
    %v310 = vpop.f32.mrb[0].mxu0
    %v311 = vadd.f32 0.0, %v310
    %v312 = vpop.f32.mrb[0].mxu0
    %v313 = vadd.f32 0.0, %v312
    %314 = vmatprep.mubr.f32.mxu0 0.0
    %315 = vmatmul.mubr.f32.gmra.mrb[0].mxu0 %v209
    %v316 = vpop.f32.mrb[0].mxu0
    %v317 = vadd.f32 0.0, %v316
    %v318 = vpop.f32.mrb[0].mxu0
    %v319 = vadd.f32 0.0, %v318
    %320 = vmatprep.mubr.f32.mxu0 0.0
    %321 = vmatmul.mubr.f32.gmra.mrb[0].mxu0 %v210
    %v322 = vpop.f32.mrb[0].mxu0
    %v323 = vadd.f32 0.0, %v322
    %v324 = vpop.f32.mrb[0].mxu0
    %v325 = vadd.f32 0.0, %v324
    %326 = vmatprep.mubr.f32.mxu0 0.0
    %327 = vmatmul.mubr.f32.gmra.mrb[0].mxu0 %v211
    %v328 = vpop.f32.mrb[0].mxu0
    %v329 = vadd.f32 0.0, %v328
    %v330 = vpop.f32.mrb[0].mxu0
    %v331 = vadd.f32 0.0, %v330
    %332 = vmatprep.mubr.f32.mxu0 0.0
    %333 = vmatmul.mubr.f32.gmra.mrb[0].mxu0 %v212
    %v334 = vpop.f32.mrb[0].mxu0
    %v335 = vadd.f32 0.0, %v334
    %v336 = vpop.f32.mrb[0].mxu0
    %v337 = vadd.f32 0.0, %v336
    %338 = vmatprep.mubr.f32.mxu0 0.0
    %339 = vmatmul.mubr.f32.gmra.mrb[0].mxu0 %v213
    %v340 = vpop.f32.mrb[0].mxu0
    %v341 = vadd.f32 0.0, %v340
    %v342 = vpop.f32.mrb[0].mxu0
    %v343 = vadd.f32 0.0, %v342
    %344 = vmatprep.mubr.f32.mxu0 0.0
    %345 = vmatmul.mubr.f32.gmra.mrb[0].mxu0 %v214
    %v346 = vpop.f32.mrb[0].mxu0
    %v347 = vadd.f32 0.0, %v346
    %v348 = vpop.f32.mrb[0].mxu0
    %v349 = vadd.f32 0.0, %v348
    %350 = vmatprep.mubr.f32.mxu0 0.0
    %351 = vmatmul.mubr.f32.gmra.mrb[0].mxu0 %v215
    %v352 = vpop.f32.mrb[0].mxu0
    %v353 = vadd.f32 0.0, %v352
    %v354 = vpop.f32.mrb[0].mxu0
    %v355 = vadd.f32 0.0, %v354
    %356 = vmatprep.mubr.f32.mxu0 0.0
    %357 = vmatmul.mubr.f32.gmra.mrb[0].mxu0 %v216
    %v358 = vpop.f32.mrb[0].mxu0
    %v359 = vadd.f32 0.0, %v358
    %v360 = vpop.f32.mrb[0].mxu0
    %v361 = vadd.f32 0.0, %v360
    %362 = vmatprep.mubr.f32.mxu0 0.0
    %363 = vmatmul.mubr.f32.gmra.mrb[0].mxu0 %v217
    %v364 = vpop.f32.mrb[0].mxu0
    %v365 = vadd.f32 0.0, %v364
    %v366 = vpop.f32.mrb[0].mxu0
    %v367 = vadd.f32 0.0, %v366
    %368 = vmatprep.mubr.f32.mxu0 0.0
    %369 = vmatmul.mubr.f32.gmra.mrb[0].mxu0 %v218
    %v370 = vpop.f32.mrb[0].mxu0
    %v371 = vadd.f32 0.0, %v370
    %v372 = vpop.f32.mrb[0].mxu0
    %v373 = vadd.f32 0.0, %v372
    %374 = vmatprep.mubr.f32.mxu0 0.0
    %375 = vmatmul.mubr.f32.gmra.mrb[0].mxu0 %v219
    %v376 = vpop.f32.mrb[0].mxu0
    %v377 = vadd.f32 0.0, %v376
    %v378 = vpop.f32.mrb[0].mxu0
    %v379 = vadd.f32 0.0, %v378
    %380 = vdwg.mxu0
    %381 = vmatprep.subr.mxu0 %v79
    %382 = vmatpush1.msra.mxu0 %v78
    %383 = vmatprep.subr.mxu0 %v87
    %384 = vmatpush1.msra.mxu0 %v86
    %385 = vmatprep.subr.mxu0 %v95
    %386 = vmatpush1.msra.mxu0 %v94
    %387 = vmatprep.subr.mxu0 %v103
    %388 = vmatpush1.msra.mxu0 %v102
    %389 = vmatprep.subr.mxu0 %v111
    %390 = vmatpush1.msra.mxu0 %v110
    %391 = vmatprep.subr.mxu0 %v119
    %392 = vmatpush1.msra.mxu0 %v118
    %393 = vmatprep.subr.mxu0 %v127
    %394 = vmatpush1.msra.mxu0 %v126
    %395 = vmatprep.subr.mxu0 %v135
    %396 = vmatpush1.msra.mxu0 %v134
    %397 = vmatprep.subr.mxu0 %v143
    %398 = vmatpush1.msra.mxu0 %v142
    %399 = vmatprep.subr.mxu0 %v151
    %400 = vmatpush1.msra.mxu0 %v150
    %401 = vmatprep.subr.mxu0 %v159
    %402 = vmatpush1.msra.mxu0 %v158
    %403 = vmatprep.subr.mxu0 %v167
    %404 = vmatpush1.msra.mxu0 %v166
    %405 = vmatprep.subr.mxu0 %v175
    %406 = vmatpush1.msra.mxu0 %v174
    %407 = vmatprep.subr.mxu0 %v183
    %408 = vmatpush1.msra.mxu0 %v182
    %409 = vmatprep.subr.mxu0 %v191
    %410 = vmatpush1.msra.mxu0 %v190
    %411 = vmatprep.subr.mxu0 %v199
    %412 = vmatpush1.msra.mxu0 %v198
    %413 = vmatprep.subr.mxu0 0.0
    %414 = vmatpush1.msra.mxu0 0.0
    %415 = vmatprep.subr.mxu0 0.0
    %416 = vmatpush1.msra.mxu0 0.0
    %417 = vmatprep.subr.mxu0 0.0
    %418 = vmatpush1.msra.mxu0 0.0
    %419 = vmatprep.subr.mxu0 0.0
    %420 = vmatpush1.msra.mxu0 0.0
    %421 = vmatprep.subr.mxu0 0.0
    %422 = vmatpush1.msra.mxu0 0.0
    %423 = vmatprep.subr.mxu0 0.0
    %424 = vmatpush1.msra.mxu0 0.0
    %425 = vmatprep.subr.mxu0 0.0
    %426 = vmatpush1.msra.mxu0 0.0
    %427 = vmatprep.subr.mxu0 0.0
    %428 = vmatpush1.msra.mxu0 0.0
    %429 = vmatprep.subr.mxu0 0.0
    %430 = vmatpush1.msra.mxu0 0.0
    %431 = vmatprep.subr.mxu0 0.0
    %432 = vmatpush1.msra.mxu0 0.0
    %433 = vmatprep.subr.mxu0 0.0
    %434 = vmatpush1.msra.mxu0 0.0
    %435 = vmatprep.subr.mxu0 0.0
    %436 = vmatpush1.msra.mxu0 0.0
    %437 = vmatprep.subr.mxu0 0.0
    %438 = vmatpush1.msra.mxu0 0.0
    %439 = vmatprep.subr.mxu0 0.0
    %440 = vmatpush1.msra.mxu0 0.0
    %441 = vmatprep.subr.mxu0 0.0
    %442 = vmatpush1.msra.mxu0 0.0
    %443 = vmatprep.subr.mxu0 0.0
    %444 = vmatpush1.msra.mxu0 0.0
    %445 = vmatprep.mubr.f32.mxu0 0.0
    %446 = vmatmul.mubr.f32.gmra.mrb[0].mxu0 %v204
    %v447 = vpop.f32.mrb[0].mxu0
    %v448 = vadd.f32 0.0, %v447
    %v449 = vpop.f32.mrb[0].mxu0
    %v450 = vadd.f32 0.0, %v449
    %451 = vmatprep.mubr.f32.mxu0 0.0
    %452 = vmatmul.mubr.f32.gmra.mrb[0].mxu0 %v205
    %v453 = vpop.f32.mrb[0].mxu0
    %v454 = vadd.f32 0.0, %v453
    %v455 = vpop.f32.mrb[0].mxu0
    %v456 = vadd.f32 0.0, %v455
    %457 = vmatprep.mubr.f32.mxu0 0.0
    %458 = vmatmul.mubr.f32.gmra.mrb[0].mxu0 %v206
    %v459 = vpop.f32.mrb[0].mxu0
    %v460 = vadd.f32 0.0, %v459
    %v461 = vpop.f32.mrb[0].mxu0
    %v462 = vadd.f32 0.0, %v461
    %463 = vmatprep.mubr.f32.mxu0 0.0
    %464 = vmatmul.mubr.f32.gmra.mrb[0].mxu0 %v207
    %v465 = vpop.f32.mrb[0].mxu0
    %v466 = vadd.f32 0.0, %v465
    %v467 = vpop.f32.mrb[0].mxu0
    %v468 = vadd.f32 0.0, %v467
    %469 = vmatprep.mubr.f32.mxu0 0.0
    %470 = vmatmul.mubr.f32.gmra.mrb[0].mxu0 %v208
    %v471 = vpop.f32.mrb[0].mxu0
    %v472 = vadd.f32 0.0, %v471
    %v473 = vpop.f32.mrb[0].mxu0
    %v474 = vadd.f32 0.0, %v473
    %475 = vmatprep.mubr.f32.mxu0 0.0
    %476 = vmatmul.mubr.f32.gmra.mrb[0].mxu0 %v209
    %v477 = vpop.f32.mrb[0].mxu0
    %v478 = vadd.f32 0.0, %v477
    %v479 = vpop.f32.mrb[0].mxu0
    %v480 = vadd.f32 0.0, %v479
    %481 = vmatprep.mubr.f32.mxu0 0.0
    %482 = vmatmul.mubr.f32.gmra.mrb[0].mxu0 %v210
    %v483 = vpop.f32.mrb[0].mxu0
    %v484 = vadd.f32 0.0, %v483
    %v485 = vpop.f32.mrb[0].mxu0
    %v486 = vadd.f32 0.0, %v485
    %487 = vmatprep.mubr.f32.mxu0 0.0
    %488 = vmatmul.mubr.f32.gmra.mrb[0].mxu0 %v211
    %v489 = vpop.f32.mrb[0].mxu0
    %v490 = vadd.f32 0.0, %v489
    %v491 = vpop.f32.mrb[0].mxu0
    %v492 = vadd.f32 0.0, %v491
    %493 = vmatprep.mubr.f32.mxu0 0.0
    %494 = vmatmul.mubr.f32.gmra.mrb[0].mxu0 %v212
    %v495 = vpop.f32.mrb[0].mxu0
    %v496 = vadd.f32 0.0, %v495
    %v497 = vpop.f32.mrb[0].mxu0
    %v498 = vadd.f32 0.0, %v497
    %499 = vmatprep.mubr.f32.mxu0 0.0
    %500 = vmatmul.mubr.f32.gmra.mrb[0].mxu0 %v213
    %v501 = vpop.f32.mrb[0].mxu0
    %v502 = vadd.f32 0.0, %v501
    %v503 = vpop.f32.mrb[0].mxu0
    %v504 = vadd.f32 0.0, %v503
    %505 = vmatprep.mubr.f32.mxu0 0.0
    %506 = vmatmul.mubr.f32.gmra.mrb[0].mxu0 %v214
    %v507 = vpop.f32.mrb[0].mxu0
    %v508 = vadd.f32 0.0, %v507
    %v509 = vpop.f32.mrb[0].mxu0
    %v510 = vadd.f32 0.0, %v509
    %511 = vmatprep.mubr.f32.mxu0 0.0
    %512 = vmatmul.mubr.f32.gmra.mrb[0].mxu0 %v215
    %v513 = vpop.f32.mrb[0].mxu0
    %v514 = vadd.f32 0.0, %v513
    %v515 = vpop.f32.mrb[0].mxu0
    %v516 = vadd.f32 0.0, %v515
    %517 = vmatprep.mubr.f32.mxu0 0.0
    %518 = vmatmul.mubr.f32.gmra.mrb[0].mxu0 %v216
    %v519 = vpop.f32.mrb[0].mxu0
    %v520 = vadd.f32 0.0, %v519
    %v521 = vpop.f32.mrb[0].mxu0
    %v522 = vadd.f32 0.0, %v521
    %523 = vmatprep.mubr.f32.mxu0 0.0
    %524 = vmatmul.mubr.f32.gmra.mrb[0].mxu0 %v217
    %v525 = vpop.f32.mrb[0].mxu0
    %v526 = vadd.f32 0.0, %v525
    %v527 = vpop.f32.mrb[0].mxu0
    %v528 = vadd.f32 0.0, %v527
    %529 = vmatprep.mubr.f32.mxu0 0.0
    %530 = vmatmul.mubr.f32.gmra.mrb[0].mxu0 %v218
    %v531 = vpop.f32.mrb[0].mxu0
    %v532 = vadd.f32 0.0, %v531
    %v533 = vpop.f32.mrb[0].mxu0
    %v534 = vadd.f32 0.0, %v533
    %535 = vmatprep.mubr.f32.mxu0 0.0
    %536 = vmatmul.mubr.f32.gmra.mrb[0].mxu0 %v219
    %v537 = vpop.f32.mrb[0].mxu0
    %v538 = vadd.f32 0.0, %v537
    %v539 = vpop.f32.mrb[0].mxu0
    %v540 = vadd.f32 0.0, %v539
    %541 = vdwg.mxu0
    %542 = vmatprep.subr.mxu0 %v81
    %543 = vmatpush1.msra.mxu0 %v80
    %544 = vmatprep.subr.mxu0 %v89
    %545 = vmatpush1.msra.mxu0 %v88
    %546 = vmatprep.subr.mxu0 %v97
    %547 = vmatpush1.msra.mxu0 %v96
    %548 = vmatprep.subr.mxu0 %v105
    %549 = vmatpush1.msra.mxu0 %v104
    %550 = vmatprep.subr.mxu0 %v113
    %551 = vmatpush1.msra.mxu0 %v112
    %552 = vmatprep.subr.mxu0 %v121
    %553 = vmatpush1.msra.mxu0 %v120
    %554 = vmatprep.subr.mxu0 %v129
    %555 = vmatpush1.msra.mxu0 %v128
    %556 = vmatprep.subr.mxu0 %v137
    %557 = vmatpush1.msra.mxu0 %v136
    %558 = vmatprep.subr.mxu0 %v145
    %559 = vmatpush1.msra.mxu0 %v144
    %560 = vmatprep.subr.mxu0 %v153
    %561 = vmatpush1.msra.mxu0 %v152
    %562 = vmatprep.subr.mxu0 %v161
    %563 = vmatpush1.msra.mxu0 %v160
    %564 = vmatprep.subr.mxu0 %v169
    %565 = vmatpush1.msra.mxu0 %v168
    %566 = vmatprep.subr.mxu0 %v177
    %567 = vmatpush1.msra.mxu0 %v176
    %568 = vmatprep.subr.mxu0 %v185
    %569 = vmatpush1.msra.mxu0 %v184
    %570 = vmatprep.subr.mxu0 %v193
    %571 = vmatpush1.msra.mxu0 %v192
    %572 = vmatprep.subr.mxu0 %v201
    %573 = vmatpush1.msra.mxu0 %v200
    %574 = vmatprep.subr.mxu0 0.0
    %575 = vmatpush1.msra.mxu0 0.0
    %576 = vmatprep.subr.mxu0 0.0
    %577 = vmatpush1.msra.mxu0 0.0
    %578 = vmatprep.subr.mxu0 0.0
    %579 = vmatpush1.msra.mxu0 0.0
    %580 = vmatprep.subr.mxu0 0.0
    %581 = vmatpush1.msra.mxu0 0.0
    %582 = vmatprep.subr.mxu0 0.0
    %583 = vmatpush1.msra.mxu0 0.0
    %584 = vmatprep.subr.mxu0 0.0
    %585 = vmatpush1.msra.mxu0 0.0
    %586 = vmatprep.subr.mxu0 0.0
    %587 = vmatpush1.msra.mxu0 0.0
    %588 = vmatprep.subr.mxu0 0.0
    %589 = vmatpush1.msra.mxu0 0.0
    %590 = vmatprep.subr.mxu0 0.0
    %591 = vmatpush1.msra.mxu0 0.0
    %592 = vmatprep.subr.mxu0 0.0
    %593 = vmatpush1.msra.mxu0 0.0
    %594 = vmatprep.subr.mxu0 0.0
    %595 = vmatpush1.msra.mxu0 0.0
    %596 = vmatprep.subr.mxu0 0.0
    %597 = vmatpush1.msra.mxu0 0.0
    %598 = vmatprep.subr.mxu0 0.0
    %599 = vmatpush1.msra.mxu0 0.0
    %600 = vmatprep.subr.mxu0 0.0
    %601 = vmatpush1.msra.mxu0 0.0
    %602 = vmatprep.subr.mxu0 0.0
    %603 = vmatpush1.msra.mxu0 0.0
    %604 = vmatprep.subr.mxu0 0.0
    %605 = vmatpush1.msra.mxu0 0.0
    %606 = vmatprep.mubr.f32.mxu0 0.0
    %607 = vmatmul.mubr.f32.gmra.mrb[0].mxu0 %v204
    %v608 = vpop.f32.mrb[0].mxu0
    %v609 = vadd.f32 0.0, %v608
    %v610 = vpop.f32.mrb[0].mxu0
    %v611 = vadd.f32 0.0, %v610
    %612 = vmatprep.mubr.f32.mxu0 0.0
    %613 = vmatmul.mubr.f32.gmra.mrb[0].mxu0 %v205
    %v614 = vpop.f32.mrb[0].mxu0
    %v615 = vadd.f32 0.0, %v614
    %v616 = vpop.f32.mrb[0].mxu0
    %v617 = vadd.f32 0.0, %v616
    %618 = vmatprep.mubr.f32.mxu0 0.0
    %619 = vmatmul.mubr.f32.gmra.mrb[0].mxu0 %v206
    %v620 = vpop.f32.mrb[0].mxu0
    %v621 = vadd.f32 0.0, %v620
    %v622 = vpop.f32.mrb[0].mxu0
    %v623 = vadd.f32 0.0, %v622
    %624 = vmatprep.mubr.f32.mxu0 0.0
    %625 = vmatmul.mubr.f32.gmra.mrb[0].mxu0 %v207
    %v626 = vpop.f32.mrb[0].mxu0
    %v627 = vadd.f32 0.0, %v626
    %v628 = vpop.f32.mrb[0].mxu0
    %v629 = vadd.f32 0.0, %v628
    %630 = vmatprep.mubr.f32.mxu0 0.0
    %631 = vmatmul.mubr.f32.gmra.mrb[0].mxu0 %v208
    %v632 = vpop.f32.mrb[0].mxu0
    %v633 = vadd.f32 0.0, %v632
    %v634 = vpop.f32.mrb[0].mxu0
    %v635 = vadd.f32 0.0, %v634
    %636 = vmatprep.mubr.f32.mxu0 0.0
    %637 = vmatmul.mubr.f32.gmra.mrb[0].mxu0 %v209
    %v638 = vpop.f32.mrb[0].mxu0
    %v639 = vadd.f32 0.0, %v638
    %v640 = vpop.f32.mrb[0].mxu0
    %v641 = vadd.f32 0.0, %v640
    %642 = vmatprep.mubr.f32.mxu0 0.0
    %643 = vmatmul.mubr.f32.gmra.mrb[0].mxu0 %v210
    %v644 = vpop.f32.mrb[0].mxu0
    %v645 = vadd.f32 0.0, %v644
    %v646 = vpop.f32.mrb[0].mxu0
    %v647 = vadd.f32 0.0, %v646
    %648 = vmatprep.mubr.f32.mxu0 0.0
    %649 = vmatmul.mubr.f32.gmra.mrb[0].mxu0 %v211
    %v650 = vpop.f32.mrb[0].mxu0
    %v651 = vadd.f32 0.0, %v650
    %v652 = vpop.f32.mrb[0].mxu0
    %v653 = vadd.f32 0.0, %v652
    %654 = vmatprep.mubr.f32.mxu0 0.0
    %655 = vmatmul.mubr.f32.gmra.mrb[0].mxu0 %v212
    %v656 = vpop.f32.mrb[0].mxu0
    %v657 = vadd.f32 0.0, %v656
    %v658 = vpop.f32.mrb[0].mxu0
    %v659 = vadd.f32 0.0, %v658
    %660 = vmatprep.mubr.f32.mxu0 0.0
    %661 = vmatmul.mubr.f32.gmra.mrb[0].mxu0 %v213
    %v662 = vpop.f32.mrb[0].mxu0
    %v663 = vadd.f32 0.0, %v662
    %v664 = vpop.f32.mrb[0].mxu0
    %v665 = vadd.f32 0.0, %v664
    %666 = vmatprep.mubr.f32.mxu0 0.0
    %667 = vmatmul.mubr.f32.gmra.mrb[0].mxu0 %v214
    %v668 = vpop.f32.mrb[0].mxu0
    %v669 = vadd.f32 0.0, %v668
    %v670 = vpop.f32.mrb[0].mxu0
    %v671 = vadd.f32 0.0, %v670
    %672 = vmatprep.mubr.f32.mxu0 0.0
    %673 = vmatmul.mubr.f32.gmra.mrb[0].mxu0 %v215
    %v674 = vpop.f32.mrb[0].mxu0
    %v675 = vadd.f32 0.0, %v674
    %v676 = vpop.f32.mrb[0].mxu0
    %v677 = vadd.f32 0.0, %v676
    %678 = vmatprep.mubr.f32.mxu0 0.0
    %679 = vmatmul.mubr.f32.gmra.mrb[0].mxu0 %v216
    %v680 = vpop.f32.mrb[0].mxu0
    %v681 = vadd.f32 0.0, %v680
    %v682 = vpop.f32.mrb[0].mxu0
    %v683 = vadd.f32 0.0, %v682
    %684 = vmatprep.mubr.f32.mxu0 0.0
    %685 = vmatmul.mubr.f32.gmra.mrb[0].mxu0 %v217
    %v686 = vpop.f32.mrb[0].mxu0
    %v687 = vadd.f32 0.0, %v686
    %v688 = vpop.f32.mrb[0].mxu0
    %v689 = vadd.f32 0.0, %v688
    %690 = vmatprep.mubr.f32.mxu0 0.0
    %691 = vmatmul.mubr.f32.gmra.mrb[0].mxu0 %v218
    %v692 = vpop.f32.mrb[0].mxu0
    %v693 = vadd.f32 0.0, %v692
    %v694 = vpop.f32.mrb[0].mxu0
    %v695 = vadd.f32 0.0, %v694
    %696 = vmatprep.mubr.f32.mxu0 0.0
    %697 = vmatmul.mubr.f32.gmra.mrb[0].mxu0 %v219
    %v698 = vpop.f32.mrb[0].mxu0
    %v699 = vadd.f32 0.0, %v698
    %v700 = vpop.f32.mrb[0].mxu0
    %v701 = vadd.f32 0.0, %v700
    %702 = vdwg.mxu0
    %703 = vmatprep.subr.mxu0 %v83
    %704 = vmatpush1.msra.mxu0 %v82
    %705 = vmatprep.subr.mxu0 %v91
    %706 = vmatpush1.msra.mxu0 %v90
    %707 = vmatprep.subr.mxu0 %v99
    %708 = vmatpush1.msra.mxu0 %v98
    %709 = vmatprep.subr.mxu0 %v107
    %710 = vmatpush1.msra.mxu0 %v106
    %711 = vmatprep.subr.mxu0 %v115
    %712 = vmatpush1.msra.mxu0 %v114
    %713 = vmatprep.subr.mxu0 %v123
    %714 = vmatpush1.msra.mxu0 %v122
    %715 = vmatprep.subr.mxu0 %v131
    %716 = vmatpush1.msra.mxu0 %v130
    %717 = vmatprep.subr.mxu0 %v139
    %718 = vmatpush1.msra.mxu0 %v138
    %719 = vmatprep.subr.mxu0 %v147
    %720 = vmatpush1.msra.mxu0 %v146
    %721 = vmatprep.subr.mxu0 %v155
    %722 = vmatpush1.msra.mxu0 %v154
    %723 = vmatprep.subr.mxu0 %v163
    %724 = vmatpush1.msra.mxu0 %v162
    %725 = vmatprep.subr.mxu0 %v171
    %726 = vmatpush1.msra.mxu0 %v170
    %727 = vmatprep.subr.mxu0 %v179
    %728 = vmatpush1.msra.mxu0 %v178
    %729 = vmatprep.subr.mxu0 %v187
    %730 = vmatpush1.msra.mxu0 %v186
    %731 = vmatprep.subr.mxu0 %v195
    %732 = vmatpush1.msra.mxu0 %v194
    %733 = vmatprep.subr.mxu0 %v203
    %734 = vmatpush1.msra.mxu0 %v202
    %735 = vmatprep.subr.mxu0 0.0
    %736 = vmatpush1.msra.mxu0 0.0
    %737 = vmatprep.subr.mxu0 0.0
    %738 = vmatpush1.msra.mxu0 0.0
    %739 = vmatprep.subr.mxu0 0.0
    %740 = vmatpush1.msra.mxu0 0.0
    %741 = vmatprep.subr.mxu0 0.0
    %742 = vmatpush1.msra.mxu0 0.0
    %743 = vmatprep.subr.mxu0 0.0
    %744 = vmatpush1.msra.mxu0 0.0
    %745 = vmatprep.subr.mxu0 0.0
    %746 = vmatpush1.msra.mxu0 0.0
    %747 = vmatprep.subr.mxu0 0.0
    %748 = vmatpush1.msra.mxu0 0.0
    %749 = vmatprep.subr.mxu0 0.0
    %750 = vmatpush1.msra.mxu0 0.0
    %751 = vmatprep.subr.mxu0 0.0
    %752 = vmatpush1.msra.mxu0 0.0
    %753 = vmatprep.subr.mxu0 0.0
    %754 = vmatpush1.msra.mxu0 0.0
    %755 = vmatprep.subr.mxu0 0.0
    %756 = vmatpush1.msra.mxu0 0.0
    %757 = vmatprep.subr.mxu0 0.0
    %758 = vmatpush1.msra.mxu0 0.0
    %759 = vmatprep.subr.mxu0 0.0
    %760 = vmatpush1.msra.mxu0 0.0
    %761 = vmatprep.subr.mxu0 0.0
    %762 = vmatpush1.msra.mxu0 0.0
    %763 = vmatprep.subr.mxu0 0.0
    %764 = vmatpush1.msra.mxu0 0.0
    %765 = vmatprep.subr.mxu0 0.0
    %766 = vmatpush1.msra.mxu0 0.0
    %767 = vmatprep.mubr.f32.mxu0 0.0
    %768 = vmatmul.mubr.f32.gmra.mrb[0].mxu0 %v204
    %v769 = vpop.f32.mrb[0].mxu0
    %v770 = vadd.f32 0.0, %v769
    %v771 = vpop.f32.mrb[0].mxu0
    %v772 = vadd.f32 0.0, %v771
    %773 = vmatprep.mubr.f32.mxu0 0.0
    %774 = vmatmul.mubr.f32.gmra.mrb[0].mxu0 %v205
    %v775 = vpop.f32.mrb[0].mxu0
    %v776 = vadd.f32 0.0, %v775
    %v777 = vpop.f32.mrb[0].mxu0
    %v778 = vadd.f32 0.0, %v777
    %779 = vmatprep.mubr.f32.mxu0 0.0
    %780 = vmatmul.mubr.f32.gmra.mrb[0].mxu0 %v206
    %v781 = vpop.f32.mrb[0].mxu0
    %v782 = vadd.f32 0.0, %v781
    %v783 = vpop.f32.mrb[0].mxu0
    %v784 = vadd.f32 0.0, %v783
    %785 = vmatprep.mubr.f32.mxu0 0.0
    %786 = vmatmul.mubr.f32.gmra.mrb[0].mxu0 %v207
    %v787 = vpop.f32.mrb[0].mxu0
    %v788 = vadd.f32 0.0, %v787
    %v789 = vpop.f32.mrb[0].mxu0
    %v790 = vadd.f32 0.0, %v789
    %791 = vmatprep.mubr.f32.mxu0 0.0
    %792 = vmatmul.mubr.f32.gmra.mrb[0].mxu0 %v208
    %v793 = vpop.f32.mrb[0].mxu0
    %v794 = vadd.f32 0.0, %v793
    %v795 = vpop.f32.mrb[0].mxu0
    %v796 = vadd.f32 0.0, %v795
    %797 = vmatprep.mubr.f32.mxu0 0.0
    %798 = vmatmul.mubr.f32.gmra.mrb[0].mxu0 %v209
    %v799 = vpop.f32.mrb[0].mxu0
    %v800 = vadd.f32 0.0, %v799
    %v801 = vpop.f32.mrb[0].mxu0
    %v802 = vadd.f32 0.0, %v801
    %803 = vmatprep.mubr.f32.mxu0 0.0
    %804 = vmatmul.mubr.f32.gmra.mrb[0].mxu0 %v210
    %v805 = vpop.f32.mrb[0].mxu0
    %v806 = vadd.f32 0.0, %v805
    %v807 = vpop.f32.mrb[0].mxu0
    %v808 = vadd.f32 0.0, %v807
    %809 = vmatprep.mubr.f32.mxu0 0.0
    %810 = vmatmul.mubr.f32.gmra.mrb[0].mxu0 %v211
    %v811 = vpop.f32.mrb[0].mxu0
    %v812 = vadd.f32 0.0, %v811
    %v813 = vpop.f32.mrb[0].mxu0
    %v814 = vadd.f32 0.0, %v813
    %815 = vmatprep.mubr.f32.mxu0 0.0
    %816 = vmatmul.mubr.f32.gmra.mrb[0].mxu0 %v212
    %v817 = vpop.f32.mrb[0].mxu0
    %v818 = vadd.f32 0.0, %v817
    %v819 = vpop.f32.mrb[0].mxu0
    %v820 = vadd.f32 0.0, %v819
    %821 = vmatprep.mubr.f32.mxu0 0.0
    %822 = vmatmul.mubr.f32.gmra.mrb[0].mxu0 %v213
    %v823 = vpop.f32.mrb[0].mxu0
    %v824 = vadd.f32 0.0, %v823
    %v825 = vpop.f32.mrb[0].mxu0
    %v826 = vadd.f32 0.0, %v825
    %827 = vmatprep.mubr.f32.mxu0 0.0
    %828 = vmatmul.mubr.f32.gmra.mrb[0].mxu0 %v214
    %v829 = vpop.f32.mrb[0].mxu0
    %v830 = vadd.f32 0.0, %v829
    %v831 = vpop.f32.mrb[0].mxu0
    %v832 = vadd.f32 0.0, %v831
    %833 = vmatprep.mubr.f32.mxu0 0.0
    %834 = vmatmul.mubr.f32.gmra.mrb[0].mxu0 %v215
    %v835 = vpop.f32.mrb[0].mxu0
    %v836 = vadd.f32 0.0, %v835
    %v837 = vpop.f32.mrb[0].mxu0
    %v838 = vadd.f32 0.0, %v837
    %839 = vmatprep.mubr.f32.mxu0 0.0
    %840 = vmatmul.mubr.f32.gmra.mrb[0].mxu0 %v216
    %v841 = vpop.f32.mrb[0].mxu0
    %v842 = vadd.f32 0.0, %v841
    %v843 = vpop.f32.mrb[0].mxu0
    %v844 = vadd.f32 0.0, %v843
    %845 = vmatprep.mubr.f32.mxu0 0.0
    %846 = vmatmul.mubr.f32.gmra.mrb[0].mxu0 %v217
    %v847 = vpop.f32.mrb[0].mxu0
    %v848 = vadd.f32 0.0, %v847
    %v849 = vpop.f32.mrb[0].mxu0
    %v850 = vadd.f32 0.0, %v849
    %851 = vmatprep.mubr.f32.mxu0 0.0
    %852 = vmatmul.mubr.f32.gmra.mrb[0].mxu0 %v218
    %v853 = vpop.f32.mrb[0].mxu0
    %v854 = vadd.f32 0.0, %v853
    %v855 = vpop.f32.mrb[0].mxu0
    %v856 = vadd.f32 0.0, %v855
    %857 = vmatprep.mubr.f32.mxu0 0.0
    %858 = vmatmul.mubr.f32.gmra.mrb[0].mxu0 %v219
    %v859 = vpop.f32.mrb[0].mxu0
    %v860 = vadd.f32 0.0, %v859
    %v861 = vpop.f32.mrb[0].mxu0
    %v862 = vadd.f32 0.0, %v861
    %863 = vdwg.mxu0
    %v864 = vxor.u32 %v287, 2147483648
    %v865 = vxor.u32 %v289, 2147483648
    %v866 = vxor.u32 %v448, 2147483648
    %v867 = vxor.u32 %v450, 2147483648
    %v868 = vxor.u32 %v293, 2147483648
    %v869 = vxor.u32 %v295, 2147483648
    %v870 = vxor.u32 %v454, 2147483648
    %v871 = vxor.u32 %v456, 2147483648
    %v872 = vxor.u32 %v299, 2147483648
    %v873 = vxor.u32 %v301, 2147483648
    %v874 = vxor.u32 %v460, 2147483648
    %v875 = vxor.u32 %v462, 2147483648
    %v876 = vxor.u32 %v305, 2147483648
    %v877 = vxor.u32 %v307, 2147483648
    %v878 = vxor.u32 %v466, 2147483648
    %v879 = vxor.u32 %v468, 2147483648
    %v880 = vxor.u32 %v311, 2147483648
    %v881 = vxor.u32 %v313, 2147483648
    %v882 = vxor.u32 %v472, 2147483648
    %v883 = vxor.u32 %v474, 2147483648
    %v884 = vxor.u32 %v317, 2147483648
    %v885 = vxor.u32 %v319, 2147483648
    %v886 = vxor.u32 %v478, 2147483648
    %v887 = vxor.u32 %v480, 2147483648
    %v888 = vxor.u32 %v323, 2147483648
    %v889 = vxor.u32 %v325, 2147483648
    %v890 = vxor.u32 %v484, 2147483648
    %v891 = vxor.u32 %v486, 2147483648
    %v892 = vxor.u32 %v329, 2147483648
    %v893 = vxor.u32 %v331, 2147483648
    %v894 = vxor.u32 %v490, 2147483648
    %v895 = vxor.u32 %v492, 2147483648
    %v896 = vxor.u32 %v335, 2147483648
    %v897 = vxor.u32 %v337, 2147483648
    %v898 = vxor.u32 %v496, 2147483648
    %v899 = vxor.u32 %v498, 2147483648
    %v900 = vxor.u32 %v341, 2147483648
    %v901 = vxor.u32 %v343, 2147483648
    %v902 = vxor.u32 %v502, 2147483648
    %v903 = vxor.u32 %v504, 2147483648
    %v904 = vxor.u32 %v347, 2147483648
    %v905 = vxor.u32 %v349, 2147483648
    %v906 = vxor.u32 %v508, 2147483648
    %v907 = vxor.u32 %v510, 2147483648
    %v908 = vxor.u32 %v353, 2147483648
    %v909 = vxor.u32 %v355, 2147483648
    %v910 = vxor.u32 %v514, 2147483648
    %v911 = vxor.u32 %v516, 2147483648
    %v912 = vxor.u32 %v359, 2147483648
    %v913 = vxor.u32 %v361, 2147483648
    %v914 = vxor.u32 %v520, 2147483648
    %v915 = vxor.u32 %v522, 2147483648
    %v916 = vxor.u32 %v365, 2147483648
    %v917 = vxor.u32 %v367, 2147483648
    %v918 = vxor.u32 %v526, 2147483648
    %v919 = vxor.u32 %v528, 2147483648
    %v920 = vxor.u32 %v371, 2147483648
    %v921 = vxor.u32 %v373, 2147483648
    %v922 = vxor.u32 %v532, 2147483648
    %v923 = vxor.u32 %v534, 2147483648
    %v924 = vxor.u32 %v377, 2147483648
    %v925 = vxor.u32 %v379, 2147483648
    %v926 = vxor.u32 %v538, 2147483648
    %v927 = vxor.u32 %v540, 2147483648
    %v928 = vmul.f32 %v864, 1.442695
    %v929 = vpow.pop %v928
    %v930 = vmul.f32 %v865, 1.442695
    %v931 = vpow.pop %v930
    %v932 = vmul.f32 %v866, 1.442695
    %v933 = vpow.pop %v932
    %v934 = vmul.f32 %v867, 1.442695
    %v935 = vpow.pop %v934
    %v936 = vmul.f32 %v868, 1.442695
    %v937 = vpow.pop %v936
    %v938 = vmul.f32 %v869, 1.442695
    %v939 = vpow.pop %v938
    %v940 = vmul.f32 %v870, 1.442695
    %v941 = vpow.pop %v940
    %v942 = vmul.f32 %v871, 1.442695
    %v943 = vpow.pop %v942
    %v944 = vmul.f32 %v872, 1.442695
    %v945 = vpow.pop %v944
    %v946 = vmul.f32 %v873, 1.442695
    %v947 = vpow.pop %v946
    %v948 = vmul.f32 %v874, 1.442695
    %v949 = vpow.pop %v948
    %v950 = vmul.f32 %v875, 1.442695
    %v951 = vpow.pop %v950
    %v952 = vmul.f32 %v876, 1.442695
    %v953 = vpow.pop %v952
    %v954 = vmul.f32 %v877, 1.442695
    %v955 = vpow.pop %v954
    %v956 = vmul.f32 %v878, 1.442695
    %v957 = vpow.pop %v956
    %v958 = vmul.f32 %v879, 1.442695
    %v959 = vpow.pop %v958
    %v960 = vmul.f32 %v880, 1.442695
    %v961 = vpow.pop %v960
    %v962 = vmul.f32 %v881, 1.442695
    %v963 = vpow.pop %v962
    %v964 = vmul.f32 %v882, 1.442695
    %v965 = vpow.pop %v964
    %v966 = vmul.f32 %v883, 1.442695
    %v967 = vpow.pop %v966
    %v968 = vmul.f32 %v884, 1.442695
    %v969 = vpow.pop %v968
    %v970 = vmul.f32 %v885, 1.442695
    %v971 = vpow.pop %v970
    %v972 = vmul.f32 %v886, 1.442695
    %v973 = vpow.pop %v972
    %v974 = vmul.f32 %v887, 1.442695
    %v975 = vpow.pop %v974
    %v976 = vmul.f32 %v888, 1.442695
    %v977 = vpow.pop %v976
    %v978 = vmul.f32 %v889, 1.442695
    %v979 = vpow.pop %v978
    %v980 = vmul.f32 %v890, 1.442695
    %v981 = vpow.pop %v980
    %v982 = vmul.f32 %v891, 1.442695
    %v983 = vpow.pop %v982
    %v984 = vmul.f32 %v892, 1.442695
    %v985 = vpow.pop %v984
    %v986 = vmul.f32 %v893, 1.442695
    %v987 = vpow.pop %v986
    %v988 = vmul.f32 %v894, 1.442695
    %v989 = vpow.pop %v988
    %v990 = vmul.f32 %v895, 1.442695
    %v991 = vpow.pop %v990
    %v992 = vmul.f32 %v896, 1.442695
    %v993 = vpow.pop %v992
    %v994 = vmul.f32 %v897, 1.442695
    %v995 = vpow.pop %v994
    %v996 = vmul.f32 %v898, 1.442695
    %v997 = vpow.pop %v996
    %v998 = vmul.f32 %v899, 1.442695
    %v999 = vpow.pop %v998
    %v1000 = vmul.f32 %v900, 1.442695
    %v1001 = vpow.pop %v1000
    %v1002 = vmul.f32 %v901, 1.442695
    %v1003 = vpow.pop %v1002
    %v1004 = vmul.f32 %v902, 1.442695
    %v1005 = vpow.pop %v1004
    %v1006 = vmul.f32 %v903, 1.442695
    %v1007 = vpow.pop %v1006
    %v1008 = vmul.f32 %v904, 1.442695
    %v1009 = vpow.pop %v1008
    %v1010 = vmul.f32 %v905, 1.442695
    %v1011 = vpow.pop %v1010
    %v1012 = vmul.f32 %v906, 1.442695
    %v1013 = vpow.pop %v1012
    %v1014 = vmul.f32 %v907, 1.442695
    %v1015 = vpow.pop %v1014
    %v1016 = vmul.f32 %v908, 1.442695
    %v1017 = vpow.pop %v1016
    %v1018 = vmul.f32 %v909, 1.442695
    %v1019 = vpow.pop %v1018
    %v1020 = vmul.f32 %v910, 1.442695
    %v1021 = vpow.pop %v1020
    %v1022 = vmul.f32 %v911, 1.442695
    %v1023 = vpow.pop %v1022
    %v1024 = vmul.f32 %v912, 1.442695
    %v1025 = vpow.pop %v1024
    %v1026 = vmul.f32 %v913, 1.442695
    %v1027 = vpow.pop %v1026
    %v1028 = vmul.f32 %v914, 1.442695
    %v1029 = vpow.pop %v1028
    %v1030 = vmul.f32 %v915, 1.442695
    %v1031 = vpow.pop %v1030
    %v1032 = vmul.f32 %v916, 1.442695
    %v1033 = vpow.pop %v1032
    %v1034 = vmul.f32 %v917, 1.442695
    %v1035 = vpow.pop %v1034
    %v1036 = vmul.f32 %v918, 1.442695
    %v1037 = vpow.pop %v1036
    %v1038 = vmul.f32 %v919, 1.442695
    %v1039 = vpow.pop %v1038
    %v1040 = vmul.f32 %v920, 1.442695
    %v1041 = vpow.pop %v1040
    %v1042 = vmul.f32 %v921, 1.442695
    %v1043 = vpow.pop %v1042
    %v1044 = vmul.f32 %v922, 1.442695
    %v1045 = vpow.pop %v1044
    %v1046 = vmul.f32 %v923, 1.442695
    %v1047 = vpow.pop %v1046
    %v1048 = vmul.f32 %v924, 1.442695
    %v1049 = vpow.pop %v1048
    %v1050 = vmul.f32 %v925, 1.442695
    %v1051 = vpow.pop %v1050
    %v1052 = vmul.f32 %v926, 1.442695
    %v1053 = vpow.pop %v1052
    %v1054 = vmul.f32 %v927, 1.442695
    %v1055 = vpow.pop %v1054
    %v1056 = vadd.f32 %v929, 1.0
    %v1057 = vadd.f32 %v931, 1.0
    %v1058 = vadd.f32 %v933, 1.0
    %v1059 = vadd.f32 %v935, 1.0
    %v1060 = vadd.f32 %v937, 1.0
    %v1061 = vadd.f32 %v939, 1.0
    %v1062 = vadd.f32 %v941, 1.0
    %v1063 = vadd.f32 %v943, 1.0
    %v1064 = vadd.f32 %v945, 1.0
    %v1065 = vadd.f32 %v947, 1.0
    %v1066 = vadd.f32 %v949, 1.0
    %v1067 = vadd.f32 %v951, 1.0
    %v1068 = vadd.f32 %v953, 1.0
    %v1069 = vadd.f32 %v955, 1.0
    %v1070 = vadd.f32 %v957, 1.0
    %v1071 = vadd.f32 %v959, 1.0
    %v1072 = vadd.f32 %v961, 1.0
    %v1073 = vadd.f32 %v963, 1.0
    %v1074 = vadd.f32 %v965, 1.0
    %v1075 = vadd.f32 %v967, 1.0
    %v1076 = vadd.f32 %v969, 1.0
    %v1077 = vadd.f32 %v971, 1.0
    %v1078 = vadd.f32 %v973, 1.0
    %v1079 = vadd.f32 %v975, 1.0
    %v1080 = vadd.f32 %v977, 1.0
    %v1081 = vadd.f32 %v979, 1.0
    %v1082 = vadd.f32 %v981, 1.0
    %v1083 = vadd.f32 %v983, 1.0
    %v1084 = vadd.f32 %v985, 1.0
    %v1085 = vadd.f32 %v987, 1.0
    %v1086 = vadd.f32 %v989, 1.0
    %v1087 = vadd.f32 %v991, 1.0
    %v1088 = vadd.f32 %v993, 1.0
    %v1089 = vadd.f32 %v995, 1.0
    %v1090 = vadd.f32 %v997, 1.0
    %v1091 = vadd.f32 %v999, 1.0
    %v1092 = vadd.f32 %v1001, 1.0
    %v1093 = vadd.f32 %v1003, 1.0
    %v1094 = vadd.f32 %v1005, 1.0
    %v1095 = vadd.f32 %v1007, 1.0
    %v1096 = vadd.f32 %v1009, 1.0
    %v1097 = vadd.f32 %v1011, 1.0
    %v1098 = vadd.f32 %v1013, 1.0
    %v1099 = vadd.f32 %v1015, 1.0
    %v1100 = vadd.f32 %v1017, 1.0
    %v1101 = vadd.f32 %v1019, 1.0
    %v1102 = vadd.f32 %v1021, 1.0
    %v1103 = vadd.f32 %v1023, 1.0
    %v1104 = vadd.f32 %v1025, 1.0
    %v1105 = vadd.f32 %v1027, 1.0
    %v1106 = vadd.f32 %v1029, 1.0
    %v1107 = vadd.f32 %v1031, 1.0
    %v1108 = vadd.f32 %v1033, 1.0
    %v1109 = vadd.f32 %v1035, 1.0
    %v1110 = vadd.f32 %v1037, 1.0
    %v1111 = vadd.f32 %v1039, 1.0
    %v1112 = vadd.f32 %v1041, 1.0
    %v1113 = vadd.f32 %v1043, 1.0
    %v1114 = vadd.f32 %v1045, 1.0
    %v1115 = vadd.f32 %v1047, 1.0
    %v1116 = vadd.f32 %v1049, 1.0
    %v1117 = vadd.f32 %v1051, 1.0
    %v1118 = vadd.f32 %v1053, 1.0
    %v1119 = vadd.f32 %v1055, 1.0
    %v1120 = vrcp.pop %v1056
    %v1121 = vmul.f32 1.0, %v1120
    %v1122 = vrcp.pop %v1057
    %v1123 = vmul.f32 1.0, %v1122
    %v1124 = vrcp.pop %v1058
    %v1125 = vmul.f32 1.0, %v1124
    %v1126 = vrcp.pop %v1059
    %v1127 = vmul.f32 1.0, %v1126
    %v1128 = vrcp.pop %v1060
    %v1129 = vmul.f32 1.0, %v1128
    %v1130 = vrcp.pop %v1061
    %v1131 = vmul.f32 1.0, %v1130
    %v1132 = vrcp.pop %v1062
    %v1133 = vmul.f32 1.0, %v1132
    %v1134 = vrcp.pop %v1063
    %v1135 = vmul.f32 1.0, %v1134
    %v1136 = vrcp.pop %v1064
    %v1137 = vmul.f32 1.0, %v1136
    %v1138 = vrcp.pop %v1065
    %v1139 = vmul.f32 1.0, %v1138
    %v1140 = vrcp.pop %v1066
    %v1141 = vmul.f32 1.0, %v1140
    %v1142 = vrcp.pop %v1067
    %v1143 = vmul.f32 1.0, %v1142
    %v1144 = vrcp.pop %v1068
    %v1145 = vmul.f32 1.0, %v1144
    %v1146 = vrcp.pop %v1069
    %v1147 = vmul.f32 1.0, %v1146
    %v1148 = vrcp.pop %v1070
    %v1149 = vmul.f32 1.0, %v1148
    %v1150 = vrcp.pop %v1071
    %v1151 = vmul.f32 1.0, %v1150
    %v1152 = vrcp.pop %v1072
    %v1153 = vmul.f32 1.0, %v1152
    %v1154 = vrcp.pop %v1073
    %v1155 = vmul.f32 1.0, %v1154
    %v1156 = vrcp.pop %v1074
    %v1157 = vmul.f32 1.0, %v1156
    %v1158 = vrcp.pop %v1075
    %v1159 = vmul.f32 1.0, %v1158
    %v1160 = vrcp.pop %v1076
    %v1161 = vmul.f32 1.0, %v1160
    %v1162 = vrcp.pop %v1077
    %v1163 = vmul.f32 1.0, %v1162
    %v1164 = vrcp.pop %v1078
    %v1165 = vmul.f32 1.0, %v1164
    %v1166 = vrcp.pop %v1079
    %v1167 = vmul.f32 1.0, %v1166
    %v1168 = vrcp.pop %v1080
    %v1169 = vmul.f32 1.0, %v1168
    %v1170 = vrcp.pop %v1081
    %v1171 = vmul.f32 1.0, %v1170
    %v1172 = vrcp.pop %v1082
    %v1173 = vmul.f32 1.0, %v1172
    %v1174 = vrcp.pop %v1083
    %v1175 = vmul.f32 1.0, %v1174
    %v1176 = vrcp.pop %v1084
    %v1177 = vmul.f32 1.0, %v1176
    %v1178 = vrcp.pop %v1085
    %v1179 = vmul.f32 1.0, %v1178
    %v1180 = vrcp.pop %v1086
    %v1181 = vmul.f32 1.0, %v1180
    %v1182 = vrcp.pop %v1087
    %v1183 = vmul.f32 1.0, %v1182
    %v1184 = vrcp.pop %v1088
    %v1185 = vmul.f32 1.0, %v1184
    %v1186 = vrcp.pop %v1089
    %v1187 = vmul.f32 1.0, %v1186
    %v1188 = vrcp.pop %v1090
    %v1189 = vmul.f32 1.0, %v1188
    %v1190 = vrcp.pop %v1091
    %v1191 = vmul.f32 1.0, %v1190
    %v1192 = vrcp.pop %v1092
    %v1193 = vmul.f32 1.0, %v1192
    %v1194 = vrcp.pop %v1093
    %v1195 = vmul.f32 1.0, %v1194
    %v1196 = vrcp.pop %v1094
    %v1197 = vmul.f32 1.0, %v1196
    %v1198 = vrcp.pop %v1095
    %v1199 = vmul.f32 1.0, %v1198
    %v1200 = vrcp.pop %v1096
    %v1201 = vmul.f32 1.0, %v1200
    %v1202 = vrcp.pop %v1097
    %v1203 = vmul.f32 1.0, %v1202
    %v1204 = vrcp.pop %v1098
    %v1205 = vmul.f32 1.0, %v1204
    %v1206 = vrcp.pop %v1099
    %v1207 = vmul.f32 1.0, %v1206
    %v1208 = vrcp.pop %v1100
    %v1209 = vmul.f32 1.0, %v1208
    %v1210 = vrcp.pop %v1101
    %v1211 = vmul.f32 1.0, %v1210
    %v1212 = vrcp.pop %v1102
    %v1213 = vmul.f32 1.0, %v1212
    %v1214 = vrcp.pop %v1103
    %v1215 = vmul.f32 1.0, %v1214
    %v1216 = vrcp.pop %v1104
    %v1217 = vmul.f32 1.0, %v1216
    %v1218 = vrcp.pop %v1105
    %v1219 = vmul.f32 1.0, %v1218
    %v1220 = vrcp.pop %v1106
    %v1221 = vmul.f32 1.0, %v1220
    %v1222 = vrcp.pop %v1107
    %v1223 = vmul.f32 1.0, %v1222
    %v1224 = vrcp.pop %v1108
    %v1225 = vmul.f32 1.0, %v1224
    %v1226 = vrcp.pop %v1109
    %v1227 = vmul.f32 1.0, %v1226
    %v1228 = vrcp.pop %v1110
    %v1229 = vmul.f32 1.0, %v1228
    %v1230 = vrcp.pop %v1111
    %v1231 = vmul.f32 1.0, %v1230
    %v1232 = vrcp.pop %v1112
    %v1233 = vmul.f32 1.0, %v1232
    %v1234 = vrcp.pop %v1113
    %v1235 = vmul.f32 1.0, %v1234
    %v1236 = vrcp.pop %v1114
    %v1237 = vmul.f32 1.0, %v1236
    %v1238 = vrcp.pop %v1115
    %v1239 = vmul.f32 1.0, %v1238
    %v1240 = vrcp.pop %v1116
    %v1241 = vmul.f32 1.0, %v1240
    %v1242 = vrcp.pop %v1117
    %v1243 = vmul.f32 1.0, %v1242
    %v1244 = vrcp.pop %v1118
    %v1245 = vmul.f32 1.0, %v1244
    %v1246 = vrcp.pop %v1119
    %v1247 = vmul.f32 1.0, %v1246
    %v1248 = vmul.f32 %v287, %v1121
    %v1249 = vmul.f32 %v289, %v1123
    %v1250 = vmul.f32 %v448, %v1125
    %v1251 = vmul.f32 %v450, %v1127
    %v1252 = vmul.f32 %v293, %v1129
    %v1253 = vmul.f32 %v295, %v1131
    %v1254 = vmul.f32 %v454, %v1133
    %v1255 = vmul.f32 %v456, %v1135
    %v1256 = vmul.f32 %v299, %v1137
    %v1257 = vmul.f32 %v301, %v1139
    %v1258 = vmul.f32 %v460, %v1141
    %v1259 = vmul.f32 %v462, %v1143
    %v1260 = vmul.f32 %v305, %v1145
    %v1261 = vmul.f32 %v307, %v1147
    %v1262 = vmul.f32 %v466, %v1149
    %v1263 = vmul.f32 %v468, %v1151
    %v1264 = vmul.f32 %v311, %v1153
    %v1265 = vmul.f32 %v313, %v1155
    %v1266 = vmul.f32 %v472, %v1157
    %v1267 = vmul.f32 %v474, %v1159
    %v1268 = vmul.f32 %v317, %v1161
    %v1269 = vmul.f32 %v319, %v1163
    %v1270 = vmul.f32 %v478, %v1165
    %v1271 = vmul.f32 %v480, %v1167
    %v1272 = vmul.f32 %v323, %v1169
    %v1273 = vmul.f32 %v325, %v1171
    %v1274 = vmul.f32 %v484, %v1173
    %v1275 = vmul.f32 %v486, %v1175
    %v1276 = vmul.f32 %v329, %v1177
    %v1277 = vmul.f32 %v331, %v1179
    %v1278 = vmul.f32 %v490, %v1181
    %v1279 = vmul.f32 %v492, %v1183
    %v1280 = vmul.f32 %v335, %v1185
    %v1281 = vmul.f32 %v337, %v1187
    %v1282 = vmul.f32 %v496, %v1189
    %v1283 = vmul.f32 %v498, %v1191
    %v1284 = vmul.f32 %v341, %v1193
    %v1285 = vmul.f32 %v343, %v1195
    %v1286 = vmul.f32 %v502, %v1197
    %v1287 = vmul.f32 %v504, %v1199
    %v1288 = vmul.f32 %v347, %v1201
    %v1289 = vmul.f32 %v349, %v1203
    %v1290 = vmul.f32 %v508, %v1205
    %v1291 = vmul.f32 %v510, %v1207
    %v1292 = vmul.f32 %v353, %v1209
    %v1293 = vmul.f32 %v355, %v1211
    %v1294 = vmul.f32 %v514, %v1213
    %v1295 = vmul.f32 %v516, %v1215
    %v1296 = vmul.f32 %v359, %v1217
    %v1297 = vmul.f32 %v361, %v1219
    %v1298 = vmul.f32 %v520, %v1221
    %v1299 = vmul.f32 %v522, %v1223
    %v1300 = vmul.f32 %v365, %v1225
    %v1301 = vmul.f32 %v367, %v1227
    %v1302 = vmul.f32 %v526, %v1229
    %v1303 = vmul.f32 %v528, %v1231
    %v1304 = vmul.f32 %v371, %v1233
    %v1305 = vmul.f32 %v373, %v1235
    %v1306 = vmul.f32 %v532, %v1237
    %v1307 = vmul.f32 %v534, %v1239
    %v1308 = vmul.f32 %v377, %v1241
    %v1309 = vmul.f32 %v379, %v1243
    %v1310 = vmul.f32 %v538, %v1245
    %v1311 = vmul.f32 %v540, %v1247
    %v1312 = vmul.f32 %v1248, %v609
    %v1313 = vmul.f32 %v1249, %v611
    %v1314 = vmul.f32 %v1250, %v770
    %v1315 = vmul.f32 %v1251, %v772
    %v1316 = vmul.f32 %v1252, %v615
    %v1317 = vmul.f32 %v1253, %v617
    %v1318 = vmul.f32 %v1254, %v776
    %v1319 = vmul.f32 %v1255, %v778
    %v1320 = vmul.f32 %v1256, %v621
    %v1321 = vmul.f32 %v1257, %v623
    %v1322 = vmul.f32 %v1258, %v782
    %v1323 = vmul.f32 %v1259, %v784
    %v1324 = vmul.f32 %v1260, %v627
    %v1325 = vmul.f32 %v1261, %v629
    %v1326 = vmul.f32 %v1262, %v788
    %v1327 = vmul.f32 %v1263, %v790
    %v1328 = vmul.f32 %v1264, %v633
    %v1329 = vmul.f32 %v1265, %v635
    %v1330 = vmul.f32 %v1266, %v794
    %v1331 = vmul.f32 %v1267, %v796
    %v1332 = vmul.f32 %v1268, %v639
    %v1333 = vmul.f32 %v1269, %v641
    %v1334 = vmul.f32 %v1270, %v800
    %v1335 = vmul.f32 %v1271, %v802
    %v1336 = vmul.f32 %v1272, %v645
    %v1337 = vmul.f32 %v1273, %v647
    %v1338 = vmul.f32 %v1274, %v806
    %v1339 = vmul.f32 %v1275, %v808
    %v1340 = vmul.f32 %v1276, %v651
    %v1341 = vmul.f32 %v1277, %v653
    %v1342 = vmul.f32 %v1278, %v812
    %v1343 = vmul.f32 %v1279, %v814
    %v1344 = vmul.f32 %v1280, %v657
    %v1345 = vmul.f32 %v1281, %v659
    %v1346 = vmul.f32 %v1282, %v818
    %v1347 = vmul.f32 %v1283, %v820
    %v1348 = vmul.f32 %v1284, %v663
    %v1349 = vmul.f32 %v1285, %v665
    %v1350 = vmul.f32 %v1286, %v824
    %v1351 = vmul.f32 %v1287, %v826
    %v1352 = vmul.f32 %v1288, %v669
    %v1353 = vmul.f32 %v1289, %v671
    %v1354 = vmul.f32 %v1290, %v830
    %v1355 = vmul.f32 %v1291, %v832
    %v1356 = vmul.f32 %v1292, %v675
    %v1357 = vmul.f32 %v1293, %v677
    %v1358 = vmul.f32 %v1294, %v836
    %v1359 = vmul.f32 %v1295, %v838
    %v1360 = vmul.f32 %v1296, %v681
    %v1361 = vmul.f32 %v1297, %v683
    %v1362 = vmul.f32 %v1298, %v842
    %v1363 = vmul.f32 %v1299, %v844
    %v1364 = vmul.f32 %v1300, %v687
    %v1365 = vmul.f32 %v1301, %v689
    %v1366 = vmul.f32 %v1302, %v848
    %v1367 = vmul.f32 %v1303, %v850
    %v1368 = vmul.f32 %v1304, %v693
    %v1369 = vmul.f32 %v1305, %v695
    %v1370 = vmul.f32 %v1306, %v854
    %v1371 = vmul.f32 %v1307, %v856
    %v1372 = vmul.f32 %v1308, %v699
    %v1373 = vmul.f32 %v1309, %v701
    %v1374 = vmul.f32 %v1310, %v860
    %v1375 = vmul.f32 %v1311, %v862
    %v1376 = vld [vmem:[#allocation2] sm:$0xff]
    %v1377 = vld [vmem:[#allocation2 + $0x8] sm:$0xff]
    %v1378 = vld [vmem:[#allocation2 + $0x10] sm:$0xff]
    %v1379 = vld [vmem:[#allocation2 + $0x18] sm:$0xff]
    %v1380 = vld [vmem:[#allocation2 + $0x20] sm:$0xff]
    %v1381 = vld [vmem:[#allocation2 + $0x28] sm:$0xff]
    %v1382 = vld [vmem:[#allocation2 + $0x30] sm:$0xff]
    %v1383 = vld [vmem:[#allocation2 + $0x38] sm:$0xff]
    %v1384 = vld [vmem:[#allocation2 + $0x40] sm:$0xff]
    %v1385 = vld [vmem:[#allocation2 + $0x48] sm:$0xff]
    %v1386 = vld [vmem:[#allocation2 + $0x50] sm:$0xff]
    %v1387 = vld [vmem:[#allocation2 + $0x58] sm:$0xff]
    %v1388 = vld [vmem:[#allocation2 + $0x60] sm:$0xff]
    %v1389 = vld [vmem:[#allocation2 + $0x68] sm:$0xff]
    %v1390 = vld [vmem:[#allocation2 + $0x70] sm:$0xff]
    %v1391 = vld [vmem:[#allocation2 + $0x78] sm:$0xff]
    %v1392 = vld [vmem:[#allocation8] sm:$0xff]
    %v1393 = vld [vmem:[#allocation8 + $0x8] sm:$0xff]
    %v1394 = vld [vmem:[#allocation8 + $0x10] sm:$0xff]
    %v1395 = vld [vmem:[#allocation8 + $0x18] sm:$0xff]
    %v1396 = vld [vmem:[#allocation8 + $0x20] sm:$0xff]
    %v1397 = vld [vmem:[#allocation8 + $0x28] sm:$0xff]
    %v1398 = vld [vmem:[#allocation8 + $0x30] sm:$0xff]
    %v1399 = vld [vmem:[#allocation8 + $0x38] sm:$0xff]
    %v1400 = vld [vmem:[#allocation8 + $0x40] sm:$0xff]
    %v1401 = vld [vmem:[#allocation8 + $0x48] sm:$0xff]
    %v1402 = vld [vmem:[#allocation8 + $0x50] sm:$0xff]
    %v1403 = vld [vmem:[#allocation8 + $0x58] sm:$0xff]
    %v1404 = vld [vmem:[#allocation8 + $0x60] sm:$0xff]
    %v1405 = vld [vmem:[#allocation8 + $0x68] sm:$0xff]
    %v1406 = vld [vmem:[#allocation8 + $0x70] sm:$0xff]
    %v1407 = vld [vmem:[#allocation8 + $0x78] sm:$0xff]
    %v1408 = vld [vmem:[#allocation8 + $0x80] sm:$0xff]
    %v1409 = vld [vmem:[#allocation8 + $0x88] sm:$0xff]
    %v1410 = vld [vmem:[#allocation8 + $0x90] sm:$0xff]
    %v1411 = vld [vmem:[#allocation8 + $0x98] sm:$0xff]
    %v1412 = vld [vmem:[#allocation8 + $0xa0] sm:$0xff]
    %v1413 = vld [vmem:[#allocation8 + $0xa8] sm:$0xff]
    %v1414 = vld [vmem:[#allocation8 + $0xb0] sm:$0xff]
    %v1415 = vld [vmem:[#allocation8 + $0xb8] sm:$0xff]
    %v1416 = vld [vmem:[#allocation8 + $0xc0] sm:$0xff]
    %v1417 = vld [vmem:[#allocation8 + $0xc8] sm:$0xff]
    %v1418 = vld [vmem:[#allocation8 + $0xd0] sm:$0xff]
    %v1419 = vld [vmem:[#allocation8 + $0xd8] sm:$0xff]
    %v1420 = vld [vmem:[#allocation8 + $0xe0] sm:$0xff]
    %v1421 = vld [vmem:[#allocation8 + $0xe8] sm:$0xff]
    %v1422 = vld [vmem:[#allocation8 + $0xf0] sm:$0xff]
    %v1423 = vld [vmem:[#allocation8 + $0xf8] sm:$0xff]
    %v1424 = vld [vmem:[#allocation8 + $0x100] sm:$0xff]
    %v1425 = vld [vmem:[#allocation8 + $0x108] sm:$0xff]
    %v1426 = vld [vmem:[#allocation8 + $0x110] sm:$0xff]
    %v1427 = vld [vmem:[#allocation8 + $0x118] sm:$0xff]
    %v1428 = vld [vmem:[#allocation8 + $0x120] sm:$0xff]
    %v1429 = vld [vmem:[#allocation8 + $0x128] sm:$0xff]
    %v1430 = vld [vmem:[#allocation8 + $0x130] sm:$0xff]
    %v1431 = vld [vmem:[#allocation8 + $0x138] sm:$0xff]
    %v1432 = vld [vmem:[#allocation8 + $0x140] sm:$0xff]
    %v1433 = vld [vmem:[#allocation8 + $0x148] sm:$0xff]
    %v1434 = vld [vmem:[#allocation8 + $0x150] sm:$0xff]
    %v1435 = vld [vmem:[#allocation8 + $0x158] sm:$0xff]
    %v1436 = vld [vmem:[#allocation8 + $0x160] sm:$0xff]
    %v1437 = vld [vmem:[#allocation8 + $0x168] sm:$0xff]
    %v1438 = vld [vmem:[#allocation8 + $0x170] sm:$0xff]
    %v1439 = vld [vmem:[#allocation8 + $0x178] sm:$0xff]
    %v1440 = vld [vmem:[#allocation8 + $0x180] sm:$0xff]
    %v1441 = vld [vmem:[#allocation8 + $0x188] sm:$0xff]
    %v1442 = vld [vmem:[#allocation8 + $0x190] sm:$0xff]
    %v1443 = vld [vmem:[#allocation8 + $0x198] sm:$0xff]
    %v1444 = vld [vmem:[#allocation8 + $0x1a0] sm:$0xff]
    %v1445 = vld [vmem:[#allocation8 + $0x1a8] sm:$0xff]
    %v1446 = vld [vmem:[#allocation8 + $0x1b0] sm:$0xff]
    %v1447 = vld [vmem:[#allocation8 + $0x1b8] sm:$0xff]
    %v1448 = vld [vmem:[#allocation8 + $0x1c0] sm:$0xff]
    %v1449 = vld [vmem:[#allocation8 + $0x1c8] sm:$0xff]
    %v1450 = vld [vmem:[#allocation8 + $0x1d0] sm:$0xff]
    %v1451 = vld [vmem:[#allocation8 + $0x1d8] sm:$0xff]
    %v1452 = vld [vmem:[#allocation8 + $0x1e0] sm:$0xff]
    %v1453 = vld [vmem:[#allocation8 + $0x1e8] sm:$0xff]
    %v1454 = vld [vmem:[#allocation8 + $0x1f0] sm:$0xff]
    %v1455 = vld [vmem:[#allocation8 + $0x1f8] sm:$0xff]
    %1456 = vmatprep.subr.mxu0 0.0
    %1457 = vmatpush1.msra.mxu0 %v1392
    %1458 = vmatprep.subr.mxu0 0.0
    %1459 = vmatpush1.msra.mxu0 %v1393
    %1460 = vmatprep.subr.mxu0 0.0
    %1461 = vmatpush1.msra.mxu0 %v1394
    %1462 = vmatprep.subr.mxu0 0.0
    %1463 = vmatpush1.msra.mxu0 %v1395
    %1464 = vmatprep.subr.mxu0 0.0
    %1465 = vmatpush1.msra.mxu0 %v1396
    %1466 = vmatprep.subr.mxu0 0.0
    %1467 = vmatpush1.msra.mxu0 %v1397
    %1468 = vmatprep.subr.mxu0 0.0
    %1469 = vmatpush1.msra.mxu0 %v1398
    %1470 = vmatprep.subr.mxu0 0.0
    %1471 = vmatpush1.msra.mxu0 %v1399
    %1472 = vmatprep.subr.mxu0 0.0
    %1473 = vmatpush1.msra.mxu0 %v1400
    %1474 = vmatprep.subr.mxu0 0.0
    %1475 = vmatpush1.msra.mxu0 %v1401
    %1476 = vmatprep.subr.mxu0 0.0
    %1477 = vmatpush1.msra.mxu0 %v1402
    %1478 = vmatprep.subr.mxu0 0.0
    %1479 = vmatpush1.msra.mxu0 %v1403
    %1480 = vmatprep.subr.mxu0 0.0
    %1481 = vmatpush1.msra.mxu0 %v1404
    %1482 = vmatprep.subr.mxu0 0.0
    %1483 = vmatpush1.msra.mxu0 %v1405
    %1484 = vmatprep.subr.mxu0 0.0
    %1485 = vmatpush1.msra.mxu0 %v1406
    %1486 = vmatprep.subr.mxu0 0.0
    %1487 = vmatpush1.msra.mxu0 %v1407
    %1488 = vmatprep.subr.mxu0 0.0
    %1489 = vmatpush1.msra.mxu0 %v1408
    %1490 = vmatprep.subr.mxu0 0.0
    %1491 = vmatpush1.msra.mxu0 %v1409
    %1492 = vmatprep.subr.mxu0 0.0
    %1493 = vmatpush1.msra.mxu0 %v1410
    %1494 = vmatprep.subr.mxu0 0.0
    %1495 = vmatpush1.msra.mxu0 %v1411
    %1496 = vmatprep.subr.mxu0 0.0
    %1497 = vmatpush1.msra.mxu0 %v1412
    %1498 = vmatprep.subr.mxu0 0.0
    %1499 = vmatpush1.msra.mxu0 %v1413
    %1500 = vmatprep.subr.mxu0 0.0
    %1501 = vmatpush1.msra.mxu0 %v1414
    %1502 = vmatprep.subr.mxu0 0.0
    %1503 = vmatpush1.msra.mxu0 %v1415
    %1504 = vmatprep.subr.mxu0 0.0
    %1505 = vmatpush1.msra.mxu0 %v1416
    %1506 = vmatprep.subr.mxu0 0.0
    %1507 = vmatpush1.msra.mxu0 %v1417
    %1508 = vmatprep.subr.mxu0 0.0
    %1509 = vmatpush1.msra.mxu0 %v1418
    %1510 = vmatprep.subr.mxu0 0.0
    %1511 = vmatpush1.msra.mxu0 %v1419
    %1512 = vmatprep.subr.mxu0 0.0
    %1513 = vmatpush1.msra.mxu0 %v1420
    %1514 = vmatprep.subr.mxu0 0.0
    %1515 = vmatpush1.msra.mxu0 %v1421
    %1516 = vmatprep.subr.mxu0 0.0
    %1517 = vmatpush1.msra.mxu0 %v1422
    %1518 = vmatprep.subr.mxu0 0.0
    %1519 = vmatpush1.msra.mxu0 %v1423
    %1520 = vmatprep.mubr.f32.mxu0 %v1313
    %1521 = vmatmul.mubr.f32.gmra.mrb[0].mxu0 %v1312
    %v1522 = vpop.f32.mrb[0].mxu0
    %v1523 = vadd.f32 0.0, %v1522
    %v1524 = vpop.f32.mrb[0].mxu0
    %1525 = vmatprep.mubr.f32.mxu0 %v1317
    %1526 = vmatmul.mubr.f32.gmra.mrb[0].mxu0 %v1316
    %v1527 = vpop.f32.mrb[0].mxu0
    %v1528 = vadd.f32 0.0, %v1527
    %v1529 = vpop.f32.mrb[0].mxu0
    %1530 = vmatprep.mubr.f32.mxu0 %v1321
    %1531 = vmatmul.mubr.f32.gmra.mrb[0].mxu0 %v1320
    %v1532 = vpop.f32.mrb[0].mxu0
    %v1533 = vadd.f32 0.0, %v1532
    %v1534 = vpop.f32.mrb[0].mxu0
    %1535 = vmatprep.mubr.f32.mxu0 %v1325
    %1536 = vmatmul.mubr.f32.gmra.mrb[0].mxu0 %v1324
    %v1537 = vpop.f32.mrb[0].mxu0
    %v1538 = vadd.f32 0.0, %v1537
    %v1539 = vpop.f32.mrb[0].mxu0
    %1540 = vmatprep.mubr.f32.mxu0 %v1329
    %1541 = vmatmul.mubr.f32.gmra.mrb[0].mxu0 %v1328
    %v1542 = vpop.f32.mrb[0].mxu0
    %v1543 = vadd.f32 0.0, %v1542
    %v1544 = vpop.f32.mrb[0].mxu0
    %1545 = vmatprep.mubr.f32.mxu0 %v1333
    %1546 = vmatmul.mubr.f32.gmra.mrb[0].mxu0 %v1332
    %v1547 = vpop.f32.mrb[0].mxu0
    %v1548 = vadd.f32 0.0, %v1547
    %v1549 = vpop.f32.mrb[0].mxu0
    %1550 = vmatprep.mubr.f32.mxu0 %v1337
    %1551 = vmatmul.mubr.f32.gmra.mrb[0].mxu0 %v1336
    %v1552 = vpop.f32.mrb[0].mxu0
    %v1553 = vadd.f32 0.0, %v1552
    %v1554 = vpop.f32.mrb[0].mxu0
    %1555 = vmatprep.mubr.f32.mxu0 %v1341
    %1556 = vmatmul.mubr.f32.gmra.mrb[0].mxu0 %v1340
    %v1557 = vpop.f32.mrb[0].mxu0
    %v1558 = vadd.f32 0.0, %v1557
    %v1559 = vpop.f32.mrb[0].mxu0
    %1560 = vmatprep.mubr.f32.mxu0 %v1345
    %1561 = vmatmul.mubr.f32.gmra.mrb[0].mxu0 %v1344
    %v1562 = vpop.f32.mrb[0].mxu0
    %v1563 = vadd.f32 0.0, %v1562
    %v1564 = vpop.f32.mrb[0].mxu0
    %1565 = vmatprep.mubr.f32.mxu0 %v1349
    %1566 = vmatmul.mubr.f32.gmra.mrb[0].mxu0 %v1348
    %v1567 = vpop.f32.mrb[0].mxu0
    %v1568 = vadd.f32 0.0, %v1567
    %v1569 = vpop.f32.mrb[0].mxu0
    %1570 = vmatprep.mubr.f32.mxu0 %v1353
    %1571 = vmatmul.mubr.f32.gmra.mrb[0].mxu0 %v1352
    %v1572 = vpop.f32.mrb[0].mxu0
    %v1573 = vadd.f32 0.0, %v1572
    %v1574 = vpop.f32.mrb[0].mxu0
    %1575 = vmatprep.mubr.f32.mxu0 %v1357
    %1576 = vmatmul.mubr.f32.gmra.mrb[0].mxu0 %v1356
    %v1577 = vpop.f32.mrb[0].mxu0
    %v1578 = vadd.f32 0.0, %v1577
    %v1579 = vpop.f32.mrb[0].mxu0
    %1580 = vmatprep.mubr.f32.mxu0 %v1361
    %1581 = vmatmul.mubr.f32.gmra.mrb[0].mxu0 %v1360
    %v1582 = vpop.f32.mrb[0].mxu0
    %v1583 = vadd.f32 0.0, %v1582
    %v1584 = vpop.f32.mrb[0].mxu0
    %1585 = vmatprep.mubr.f32.mxu0 %v1365
    %1586 = vmatmul.mubr.f32.gmra.mrb[0].mxu0 %v1364
    %v1587 = vpop.f32.mrb[0].mxu0
    %v1588 = vadd.f32 0.0, %v1587
    %v1589 = vpop.f32.mrb[0].mxu0
    %1590 = vmatprep.mubr.f32.mxu0 %v1369
    %1591 = vmatmul.mubr.f32.gmra.mrb[0].mxu0 %v1368
    %v1592 = vpop.f32.mrb[0].mxu0
    %v1593 = vadd.f32 0.0, %v1592
    %v1594 = vpop.f32.mrb[0].mxu0
    %1595 = vmatprep.mubr.f32.mxu0 %v1373
    %1596 = vmatmul.mubr.f32.gmra.mrb[0].mxu0 %v1372
    %v1597 = vpop.f32.mrb[0].mxu0
    %v1598 = vadd.f32 0.0, %v1597
    %v1599 = vpop.f32.mrb[0].mxu0
    %1600 = vdwg.mxu0
    %1601 = vmatprep.subr.mxu0 0.0
    %1602 = vmatpush1.msra.mxu0 %v1424
    %1603 = vmatprep.subr.mxu0 0.0
    %1604 = vmatpush1.msra.mxu0 %v1425
    %1605 = vmatprep.subr.mxu0 0.0
    %1606 = vmatpush1.msra.mxu0 %v1426
    %1607 = vmatprep.subr.mxu0 0.0
    %1608 = vmatpush1.msra.mxu0 %v1427
    %1609 = vmatprep.subr.mxu0 0.0
    %1610 = vmatpush1.msra.mxu0 %v1428
    %1611 = vmatprep.subr.mxu0 0.0
    %1612 = vmatpush1.msra.mxu0 %v1429
    %1613 = vmatprep.subr.mxu0 0.0
    %1614 = vmatpush1.msra.mxu0 %v1430
    %1615 = vmatprep.subr.mxu0 0.0
    %1616 = vmatpush1.msra.mxu0 %v1431
    %1617 = vmatprep.subr.mxu0 0.0
    %1618 = vmatpush1.msra.mxu0 %v1432
    %1619 = vmatprep.subr.mxu0 0.0
    %1620 = vmatpush1.msra.mxu0 %v1433
    %1621 = vmatprep.subr.mxu0 0.0
    %1622 = vmatpush1.msra.mxu0 %v1434
    %1623 = vmatprep.subr.mxu0 0.0
    %1624 = vmatpush1.msra.mxu0 %v1435
    %1625 = vmatprep.subr.mxu0 0.0
    %1626 = vmatpush1.msra.mxu0 %v1436
    %1627 = vmatprep.subr.mxu0 0.0
    %1628 = vmatpush1.msra.mxu0 %v1437
    %1629 = vmatprep.subr.mxu0 0.0
    %1630 = vmatpush1.msra.mxu0 %v1438
    %1631 = vmatprep.subr.mxu0 0.0
    %1632 = vmatpush1.msra.mxu0 %v1439
    %1633 = vmatprep.subr.mxu0 0.0
    %1634 = vmatpush1.msra.mxu0 %v1440
    %1635 = vmatprep.subr.mxu0 0.0
    %1636 = vmatpush1.msra.mxu0 %v1441
    %1637 = vmatprep.subr.mxu0 0.0
    %1638 = vmatpush1.msra.mxu0 %v1442
    %1639 = vmatprep.subr.mxu0 0.0
    %1640 = vmatpush1.msra.mxu0 %v1443
    %1641 = vmatprep.subr.mxu0 0.0
    %1642 = vmatpush1.msra.mxu0 %v1444
    %1643 = vmatprep.subr.mxu0 0.0
    %1644 = vmatpush1.msra.mxu0 %v1445
    %1645 = vmatprep.subr.mxu0 0.0
    %1646 = vmatpush1.msra.mxu0 %v1446
    %1647 = vmatprep.subr.mxu0 0.0
    %1648 = vmatpush1.msra.mxu0 %v1447
    %1649 = vmatprep.subr.mxu0 0.0
    %1650 = vmatpush1.msra.mxu0 %v1448
    %1651 = vmatprep.subr.mxu0 0.0
    %1652 = vmatpush1.msra.mxu0 %v1449
    %1653 = vmatprep.subr.mxu0 0.0
    %1654 = vmatpush1.msra.mxu0 %v1450
    %1655 = vmatprep.subr.mxu0 0.0
    %1656 = vmatpush1.msra.mxu0 %v1451
    %1657 = vmatprep.subr.mxu0 0.0
    %1658 = vmatpush1.msra.mxu0 %v1452
    %1659 = vmatprep.subr.mxu0 0.0
    %1660 = vmatpush1.msra.mxu0 %v1453
    %1661 = vmatprep.subr.mxu0 0.0
    %1662 = vmatpush1.msra.mxu0 %v1454
    %1663 = vmatprep.subr.mxu0 0.0
    %1664 = vmatpush1.msra.mxu0 %v1455
    %1665 = vmatprep.mubr.f32.mxu0 %v1315
    %1666 = vmatmul.mubr.f32.gmra.mrb[0].mxu0 %v1314
    %v1667 = vpop.f32.mrb[0].mxu0
    %v1668 = vadd.f32 %v1523, %v1667
    %v1669 = vpop.f32.mrb[0].mxu0
    %1670 = vmatprep.mubr.f32.mxu0 %v1319
    %1671 = vmatmul.mubr.f32.gmra.mrb[0].mxu0 %v1318
    %v1672 = vpop.f32.mrb[0].mxu0
    %v1673 = vadd.f32 %v1528, %v1672
    %v1674 = vpop.f32.mrb[0].mxu0
    %1675 = vmatprep.mubr.f32.mxu0 %v1323
    %1676 = vmatmul.mubr.f32.gmra.mrb[0].mxu0 %v1322
    %v1677 = vpop.f32.mrb[0].mxu0
    %v1678 = vadd.f32 %v1533, %v1677
    %v1679 = vpop.f32.mrb[0].mxu0
    %1680 = vmatprep.mubr.f32.mxu0 %v1327
    %1681 = vmatmul.mubr.f32.gmra.mrb[0].mxu0 %v1326
    %v1682 = vpop.f32.mrb[0].mxu0
    %v1683 = vadd.f32 %v1538, %v1682
    %v1684 = vpop.f32.mrb[0].mxu0
    %1685 = vmatprep.mubr.f32.mxu0 %v1331
    %1686 = vmatmul.mubr.f32.gmra.mrb[0].mxu0 %v1330
    %v1687 = vpop.f32.mrb[0].mxu0
    %v1688 = vadd.f32 %v1543, %v1687
    %v1689 = vpop.f32.mrb[0].mxu0
    %1690 = vmatprep.mubr.f32.mxu0 %v1335
    %1691 = vmatmul.mubr.f32.gmra.mrb[0].mxu0 %v1334
    %v1692 = vpop.f32.mrb[0].mxu0
    %v1693 = vadd.f32 %v1548, %v1692
    %v1694 = vpop.f32.mrb[0].mxu0
    %1695 = vmatprep.mubr.f32.mxu0 %v1339
    %1696 = vmatmul.mubr.f32.gmra.mrb[0].mxu0 %v1338
    %v1697 = vpop.f32.mrb[0].mxu0
    %v1698 = vadd.f32 %v1553, %v1697
    %v1699 = vpop.f32.mrb[0].mxu0
    %1700 = vmatprep.mubr.f32.mxu0 %v1343
    %1701 = vmatmul.mubr.f32.gmra.mrb[0].mxu0 %v1342
    %v1702 = vpop.f32.mrb[0].mxu0
    %v1703 = vadd.f32 %v1558, %v1702
    %v1704 = vpop.f32.mrb[0].mxu0
    %1705 = vmatprep.mubr.f32.mxu0 %v1347
    %1706 = vmatmul.mubr.f32.gmra.mrb[0].mxu0 %v1346
    %v1707 = vpop.f32.mrb[0].mxu0
    %v1708 = vadd.f32 %v1563, %v1707
    %v1709 = vpop.f32.mrb[0].mxu0
    %1710 = vmatprep.mubr.f32.mxu0 %v1351
    %1711 = vmatmul.mubr.f32.gmra.mrb[0].mxu0 %v1350
    %v1712 = vpop.f32.mrb[0].mxu0
    %v1713 = vadd.f32 %v1568, %v1712
    %v1714 = vpop.f32.mrb[0].mxu0
    %1715 = vmatprep.mubr.f32.mxu0 %v1355
    %1716 = vmatmul.mubr.f32.gmra.mrb[0].mxu0 %v1354
    %v1717 = vpop.f32.mrb[0].mxu0
    %v1718 = vadd.f32 %v1573, %v1717
    %v1719 = vpop.f32.mrb[0].mxu0
    %1720 = vmatprep.mubr.f32.mxu0 %v1359
    %1721 = vmatmul.mubr.f32.gmra.mrb[0].mxu0 %v1358
    %v1722 = vpop.f32.mrb[0].mxu0
    %v1723 = vadd.f32 %v1578, %v1722
    %v1724 = vpop.f32.mrb[0].mxu0
    %1725 = vmatprep.mubr.f32.mxu0 %v1363
    %1726 = vmatmul.mubr.f32.gmra.mrb[0].mxu0 %v1362
    %v1727 = vpop.f32.mrb[0].mxu0
    %v1728 = vadd.f32 %v1583, %v1727
    %v1729 = vpop.f32.mrb[0].mxu0
    %1730 = vmatprep.mubr.f32.mxu0 %v1367
    %1731 = vmatmul.mubr.f32.gmra.mrb[0].mxu0 %v1366
    %v1732 = vpop.f32.mrb[0].mxu0
    %v1733 = vadd.f32 %v1588, %v1732
    %v1734 = vpop.f32.mrb[0].mxu0
    %1735 = vmatprep.mubr.f32.mxu0 %v1371
    %1736 = vmatmul.mubr.f32.gmra.mrb[0].mxu0 %v1370
    %v1737 = vpop.f32.mrb[0].mxu0
    %v1738 = vadd.f32 %v1593, %v1737
    %v1739 = vpop.f32.mrb[0].mxu0
    %1740 = vmatprep.mubr.f32.mxu0 %v1375
    %1741 = vmatmul.mubr.f32.gmra.mrb[0].mxu0 %v1374
    %v1742 = vpop.f32.mrb[0].mxu0
    %v1743 = vadd.f32 %v1598, %v1742
    %v1744 = vpop.f32.mrb[0].mxu0
    %1745 = vdwg.mxu0
    %v1746 = vadd.f32 %v1376, %v1668
    %v1747 = vadd.f32 %v1377, %v1673
    %v1748 = vadd.f32 %v1378, %v1678
    %v1749 = vadd.f32 %v1379, %v1683
    %v1750 = vadd.f32 %v1380, %v1688
    %v1751 = vadd.f32 %v1381, %v1693
    %v1752 = vadd.f32 %v1382, %v1698
    %v1753 = vadd.f32 %v1383, %v1703
    %v1754 = vadd.f32 %v1384, %v1708
    %v1755 = vadd.f32 %v1385, %v1713
    %v1756 = vadd.f32 %v1386, %v1718
    %v1757 = vadd.f32 %v1387, %v1723
    %v1758 = vadd.f32 %v1388, %v1728
    %v1759 = vadd.f32 %v1389, %v1733
    %v1760 = vadd.f32 %v1390, %v1738
    %v1761 = vadd.f32 %v1391, %v1743
    %1762 = vst [vmem:[#allocation2] sm:$0xff] %v1746
    %1763 = vst [vmem:[#allocation2 + $0x8] sm:$0xff] %v1747
    %1764 = vst [vmem:[#allocation2 + $0x10] sm:$0xff] %v1748
    %1765 = vst [vmem:[#allocation2 + $0x18] sm:$0xff] %v1749
    %1766 = vst [vmem:[#allocation2 + $0x20] sm:$0xff] %v1750
    %1767 = vst [vmem:[#allocation2 + $0x28] sm:$0xff] %v1751
    %1768 = vst [vmem:[#allocation2 + $0x30] sm:$0xff] %v1752
    %1769 = vst [vmem:[#allocation2 + $0x38] sm:$0xff] %v1753
    %1770 = vst [vmem:[#allocation2 + $0x40] sm:$0xff] %v1754
    %1771 = vst [vmem:[#allocation2 + $0x48] sm:$0xff] %v1755
    %1772 = vst [vmem:[#allocation2 + $0x50] sm:$0xff] %v1756
    %1773 = vst [vmem:[#allocation2 + $0x58] sm:$0xff] %v1757
    %1774 = vst [vmem:[#allocation2 + $0x60] sm:$0xff] %v1758
    %1775 = vst [vmem:[#allocation2 + $0x68] sm:$0xff] %v1759
    %1776 = vst [vmem:[#allocation2 + $0x70] sm:$0xff] %v1760
    %1777 = vst [vmem:[#allocation2 + $0x78] sm:$0xff] %v1761
    // Predicated region
    $region30: #{tpu_custom_call.1} parent=1 // pred_check
      %p1778 = pneg %p56
    $region31: #{tpu_custom_call.1} parent=1 // pred_check_branch
      %1780 = sbr.rel (%p1778) target = $region33
    $region32: #{tpu_custom_call.1} parent=1 // pred_region
      %v1781 = vld [vmem:[#allocation2] sm:$0xff]
      %v1782 = vld [vmem:[#allocation2 + $0x8] sm:$0xff]
      %v1783 = vld [vmem:[#allocation2 + $0x10] sm:$0xff]
      %v1784 = vld [vmem:[#allocation2 + $0x18] sm:$0xff]
      %v1785 = vld [vmem:[#allocation2 + $0x20] sm:$0xff]
      %v1786 = vld [vmem:[#allocation2 + $0x28] sm:$0xff]
      %v1787 = vld [vmem:[#allocation2 + $0x30] sm:$0xff]
      %v1788 = vld [vmem:[#allocation2 + $0x38] sm:$0xff]
      %v1789 = vld [vmem:[#allocation2 + $0x40] sm:$0xff]
      %v1790 = vld [vmem:[#allocation2 + $0x48] sm:$0xff]
      %v1791 = vld [vmem:[#allocation2 + $0x50] sm:$0xff]
      %v1792 = vld [vmem:[#allocation2 + $0x58] sm:$0xff]
      %v1793 = vld [vmem:[#allocation2 + $0x60] sm:$0xff]
      %v1794 = vld [vmem:[#allocation2 + $0x68] sm:$0xff]
      %v1795 = vld [vmem:[#allocation2 + $0x70] sm:$0xff]
      %v1796 = vld [vmem:[#allocation2 + $0x78] sm:$0xff]
      %1797 = vst [vmem:[#allocation9] sm:$0xff] %v1781
      %1798 = vst [vmem:[#allocation9 + $0x8] sm:$0xff] %v1782
      %1799 = vst [vmem:[#allocation9 + $0x10] sm:$0xff] %v1783
      %1800 = vst [vmem:[#allocation9 + $0x18] sm:$0xff] %v1784
      %1801 = vst [vmem:[#allocation9 + $0x20] sm:$0xff] %v1785
      %1802 = vst [vmem:[#allocation9 + $0x28] sm:$0xff] %v1786
      %1803 = vst [vmem:[#allocation9 + $0x30] sm:$0xff] %v1787
      %1804 = vst [vmem:[#allocation9 + $0x38] sm:$0xff] %v1788
      %1805 = vst [vmem:[#allocation9 + $0x40] sm:$0xff] %v1789
      %1806 = vst [vmem:[#allocation9 + $0x48] sm:$0xff] %v1790
      %1807 = vst [vmem:[#allocation9 + $0x50] sm:$0xff] %v1791
      %1808 = vst [vmem:[#allocation9 + $0x58] sm:$0xff] %v1792
      %1809 = vst [vmem:[#allocation9 + $0x60] sm:$0xff] %v1793
      %1810 = vst [vmem:[#allocation9 + $0x68] sm:$0xff] %v1794
      %1811 = vst [vmem:[#allocation9 + $0x70] sm:$0xff] %v1795
      %1812 = vst [vmem:[#allocation9 + $0x78] sm:$0xff] %v1796
    $region33: #{tpu_custom_call.1} parent=1 // pred_fallthru
      _
    // Predicated region
    $region34: #{tpu_custom_call.1} parent=1 // pred_check
      _
    $region35: #{tpu_custom_call.1} parent=1 // pred_check_branch
      %1814 = sbr.rel (0) target = $region37
    $region36: #{tpu_custom_call.1} parent=1 // pred_region
      %s1816 = ssub.s32 2048, 2048
      %1817 = vsyncadd [#allocation5], %s1816
      %s1818 = sshll.u32 [#allocation9], 4
      %s1819 = int_to_ptr.vmem [resolvable:$true] %s1818
      %1824 = dma.vmem_to_hbm [thread:$0]  %s1819, 2048, %s3, [#allocation5], 128, 128, 8
    $region37: #{tpu_custom_call.1} parent=1 // pred_fallthru
      _
    // Predicated region
    $region38: #{tpu_custom_call.1} parent=1 // pred_check
      _
    $region39: #{tpu_custom_call.1} parent=1 // pred_check_branch
      %1826 = sbr.rel (0) target = $region41
    $region40: #{tpu_custom_call.1} parent=1 // pred_region
      %1827 = dma.done [#allocation5], 2048
    $region41: #{tpu_custom_call.1} parent=1 // pred_fallthru
      _
    %1828 = vsyncpa [#allocation4], 1
    %1829 = vsyncpa [#allocation7], 1
    %1830 = vsyncpa [#allocation5], 1

</llo_original>
